<compile_context>
chip_gen: v6e
topology: v6e:2x2x1
jax: 0.10.0
libtpu: 0.0.40
codegen_flags: <defaults>
</compile_context>

<pallas_src>
import functools

import jax
import jax.numpy as jnp
import numpy as np
from jax.experimental import pallas as pl
from jax.experimental.pallas import tpu as pltpu


# ----------------------------------------------------------------------------
# Pallas kernel: one block of whole samples (nb * L rows) per grid step.
# ----------------------------------------------------------------------------
def _block_kernel(x_ref,
                  wA_ref, bA_ref,
                  wc_ref, wm1_ref, wp1_ref, w2_ref, b35_ref,
                  wo35_ref, wo1p_ref, bo_ref,
                  o_ref, *, scale, seq_len):
    f32 = jnp.float32
    bf16 = jnp.bfloat16

    xb = x_ref[...]                                   # (R, Cin), bf16
    R = xb.shape[0]

    # ---- stage 1: fused 1x1 convs (+ folded BN) + relu ----------------------
    y = jnp.dot(xb, wA_ref[...], preferred_element_type=f32) + bA_ref[...]
    y = jnp.maximum(y, 0.0)                           # (R, 192) = [t3 | t5 | h1]
    yb = y.astype(bf16)
    t35 = yb[:, 0:128]                                # lane-aligned [t3|t5] slice
    t35_f = y[:, 0:128]                               # f32 view for rolls
    t5_f = y[:, 64:128]                               # k=5 mid activations (f32)

    # within-sample position of every row (conv boundary mask after the roll)
    l_idx = jax.lax.broadcasted_iota(jnp.int32, (R, 1), 0) % seq_len

    def shifted(v_f32, d):
        """Rows shifted so result[r] = v[r + d]; rows whose source position lies
        outside the sample are zeroed (== zero-padded conv input).  Rolled and
        masked exactly once per shift, shared by both depth-conv branches."""
        rolled = pltpu.roll(v_f32, shift=(-d) % R, axis=0)
        valid = (l_idx + d >= 0) & (l_idx + d < seq_len)
        return jnp.where(valid, rolled, 0.0).astype(bf16)

    # ---- k=3 / k=5 convs: per-shift block-diagonal matmuls ------------------
    # center taps (+ folded BN biases) initialize the (R,160)=[h3|h5] accumulator
    acc = jnp.dot(t35, wc_ref[...], preferred_element_type=f32) + b35_ref[...]
    # d = -1 / +1 : both branches via one K=128, N=160 block-diag matmul each
    acc = acc + jnp.dot(shifted(t35_f, -1), wm1_ref[...], preferred_element_type=f32)
    acc = acc + jnp.dot(shifted(t35_f, +1), wp1_ref[...], preferred_element_type=f32)
    # d = +/-2 : only the k=5 branch; stack both shifted copies along lanes so a
    # single K=128 matmul covers them (weight zero-padded to 160 output cols).
    x2 = jnp.concatenate([shifted(t5_f, +2), shifted(t5_f, -2)], axis=1)  # (R,128)
    acc = acc + jnp.dot(x2, w2_ref[...], preferred_element_type=f32)
    h35 = jnp.maximum(acc, 0.0)                       # (R, 160) = [h3 | h5]

    # ---- fused 1x1 projection (+ folded BN), no concat ----------------------
    up = jnp.dot(h35.astype(bf16), wo35_ref[...], preferred_element_type=f32)
    up = up + jnp.dot(yb, wo1p_ref[...], preferred_element_type=f32)  # picks h1
    up = up + bo_ref[...]

    # ---- residual + relu (element-wise stays f32) ----------------------------
    o_ref[...] = jnp.maximum(xb.astype(f32) * scale + up, 0.0)


# ----------------------------------------------------------------------------
# Tiling helpers.
# ----------------------------------------------------------------------------
def _pick_samples_per_block(n, seq_len, target_rows):
    """Whole samples per grid step: largest count whose rows fit target_rows and
    keep the sublane dim legal; prefer a grid of length >= 2 (2-TC chips).
    Never falls back to the whole batch when nothing fits the target."""
    def legal(nb):
        rows = nb * seq_len
        return n % nb == 0 and (rows % 8 == 0 or nb == n)

    fitting = [nb for nb in range(1, n + 1)
               if legal(nb) and nb * seq_len <= target_rows]
    if fitting:
        multi = [nb for nb in fitting if n // nb >= 2]   # keep both TCs busy
        return max(multi) if multi else max(fitting)
    legal_all = [nb for nb in range(1, n + 1) if legal(nb)]
    return min(legal_all) if legal_all else n


def _tpu_tuning():
    """(target_rows, vmem_limit_bytes) picked from the detected VMEM capacity."""
    try:
        vmem_bytes = pltpu.get_tpu_info().vmem_capacity_bytes
    except Exception:
        vmem_bytes = None
    if vmem_bytes is None:
        return 1024, None                 # conservative: keep the default limit
    if vmem_bytes <= (64 << 20):          # v7x-class: 64 MiB VMEM, 2 TensorCores
        return 1024, 40 << 20
    return 2048, 64 << 20                 # v5e / v6e: 128 MiB physical VMEM


# ----------------------------------------------------------------------------
# Wrapper.
# ----------------------------------------------------------------------------
def inception_resnet_block_pallas(x_nlc, params, scale):
    """x_nlc: (N, L, Cin) float32 channels-last; returns (N, L, Cin) float32."""
    N, L, Cin = x_nlc.shape
    (wA, bA, wc, wm1, wp1, w2, b35, wo35, wo1p, bo) = params

    M = N * L
    x2d = x_nlc.reshape(M, Cin).astype(jnp.bfloat16)   # bf16 at the call boundary

    target_rows, vmem_limit = _tpu_tuning()
    nb = _pick_samples_per_block(N, L, target_rows)    # whole samples per step
    tm = nb * L
    grid = (M // tm,)

    def full(arr):
        shp = arr.shape
        return pl.BlockSpec(shp, lambda b: (0,) * len(shp))

    grid_spec = pltpu.PrefetchScalarGridSpec(
        num_scalar_prefetch=0,
        grid=grid,
        in_specs=[
            pl.BlockSpec((tm, Cin), lambda b: (b, 0)),          # x (bf16)
            full(wA), full(bA),                                 # fused 1x1 stage
            full(wc), full(wm1), full(wp1), full(w2), full(b35),  # depth convs
            full(wo35), full(wo1p), full(bo),                   # output projection
        ],
        out_specs=pl.BlockSpec((tm, Cin), lambda b: (b, 0)),
    )

    # advisory cost estimate so XLA can schedule neighbours around the call
    flops = 2 * M * (Cin * 192 + 4 * 128 * 160 + (160 + 192) * Cin)
    w_bytes = sum(int(np.prod(p.shape)) * p.dtype.itemsize for p in params)
    cost = pl.CostEstimate(flops=flops, transcendentals=0,
                           bytes_accessed=M * Cin * (2 + 4) + w_bytes)

    out2d = pl.pallas_call(
        functools.partial(_block_kernel, scale=scale, seq_len=L),
        out_shape=jax.ShapeDtypeStruct((M, Cin), jnp.float32),
        grid_spec=grid_spec,
        compiler_params=pltpu.CompilerParams(
            dimension_semantics=("parallel",),
            vmem_limit_bytes=vmem_limit),
        cost_estimate=cost,
    )(x2d, wA, bA, wc, wm1, wp1, w2, b35, wo35, wo1p, bo)

    return out2d.reshape(N, L, Cin)


# ----------------------------------------------------------------------------
# Parameter construction (deterministic) + BN folding + per-shift weight packing.
# ----------------------------------------------------------------------------
def _make_conv_bn(key, cin, cout, k):
    ks = jax.random.split(key, 6)
    w = jax.random.normal(ks[0], (cout, cin, k), jnp.float32) * 0.1   # OIK
    b = jax.random.normal(ks[1], (cout,), jnp.float32) * 0.1
    gamma = jax.random.uniform(ks[2], (cout,), jnp.float32, 0.5, 1.5)
    beta = jax.random.normal(ks[3], (cout,), jnp.float32) * 0.1
    mean = jax.random.normal(ks[4], (cout,), jnp.float32) * 0.1
    var = jax.random.uniform(ks[5], (cout,), jnp.float32, 0.5, 1.5)
    return dict(w=w, b=b, gamma=gamma, beta=beta, mean=mean, var=var)


def _fold(p, eps):
    """Fold conv bias + inference BN into (scaled weight, shift)."""
    s = p["gamma"] / jnp.sqrt(p["var"] + eps)                 # (O,)
    w_s = p["w"] * s[:, None, None]                           # (O, I, K)
    b_f = (p["b"] - p["mean"]) * s + p["beta"]                # (O,)
    return w_s, b_f


def build_params(key, cin):
    keys = jax.random.split(key, 6)
    p1 = _make_conv_bn(keys[0], cin, 64, 1)     # branch1x1
    p3a = _make_conv_bn(keys[1], cin, 48, 1)    # branch3x3_1
    p3b = _make_conv_bn(keys[2], 48, 64, 3)     # branch3x3_2
    p5a = _make_conv_bn(keys[3], cin, 64, 1)    # branch5x5_1
    p5b = _make_conv_bn(keys[4], 64, 96, 5)     # branch5x5_2
    po = _make_conv_bn(keys[5], 224, cin, 1)    # conv2d + final bn

    eps_b = 0.001   # BasicConv1d BN eps
    eps_f = 1e-5    # final BN default eps

    w1s, b1f = _fold(p1, eps_b)
    w3as, b3af = _fold(p3a, eps_b)
    w3bs, b3bf = _fold(p3b, eps_b)
    w5as, b5af = _fold(p5a, eps_b)
    w5bs, b5bf = _fold(p5b, eps_b)
    wos, bof = _fold(po, eps_f)

    f32 = jnp.float32

    # --- fused stage-1 weight: columns ordered [t3(pad 48->64) | t5 | h1] ----
    w3a_io = jnp.pad(jnp.transpose(w3as[:, :, 0]), ((0, 0), (0, 16)))   # (Cin,64)
    w5a_io = jnp.transpose(w5as[:, :, 0])                               # (Cin,64)
    w1_io = jnp.transpose(w1s[:, :, 0])                                 # (Cin,64)
    wA = jnp.concatenate([w3a_io, w5a_io, w1_io], axis=1)               # (Cin,192)
    bA = jnp.concatenate([jnp.pad(b3af, (0, 16)), b5af, b1f])[None]     # (1,192)

    # --- depth-conv weights, packed per SHIFT as block-diagonals -------------
    # tap index t <-> offset d = t - pad  (k=3: pad 1, k=5: pad 2)
    w3b_kio = jnp.pad(jnp.transpose(w3bs, (2, 1, 0)),
                      ((0, 0), (0, 16), (0, 0)))          # (3, 64, 64)
    w5b_kio = jnp.transpose(w5bs, (2, 1, 0))              # (5, 64, 96)

    def blockdiag(a3, a5):
        top = jnp.concatenate([a3, jnp.zeros((64, 96), f32)], axis=1)
        bot = jnp.concatenate([jnp.zeros((64, 64), f32), a5], axis=1)
        return jnp.concatenate([top, bot], axis=0)         # (128, 160)

    wc = blockdiag(w3b_kio[1], w5b_kio[2])                 # d =  0
    wm1 = blockdiag(w3b_kio[0], w5b_kio[1])                # d = -1
    wp1 = blockdiag(w3b_kio[2], w5b_kio[3])                # d = +1
    # d = +/-2 stacked: input rows are [roll(t5,+2) | roll(t5,-2)];
    # h3 output columns zero-padded so the accumulator add stays lane-aligned.
    z64 = jnp.zeros((64, 64), f32)
    w2 = jnp.concatenate([
        jnp.concatenate([z64, w5b_kio[4]], axis=1),        # d = +2 tap
        jnp.concatenate([z64, w5b_kio[0]], axis=1),        # d = -2 tap
    ], axis=0)                                             # (128, 160)
    b35 = jnp.concatenate([b3bf, b5bf])[None]              # (1, 160)

    # --- output projection: wo rows follow the concat order [h1 | h3 | h5] ---
    wo_io = jnp.transpose(wos[:, :, 0])                    # (224, Cin)
    wo35 = wo_io[64:224]                                   # (160, Cin)  [h3|h5]
    wo1p = jnp.concatenate([jnp.zeros((128, cin), f32),
                            wo_io[0:64]], axis=0)          # (192, Cin)  picks h1
    bo = bof[None]                                         # (1, Cin)

    bf16 = jnp.bfloat16
    kernel_params = (
        wA.astype(bf16), bA,
        wc.astype(bf16), wm1.astype(bf16), wp1.astype(bf16), w2.astype(bf16),
        b35,
        wo35.astype(bf16), wo1p.astype(bf16), bo,
    )
    raw = dict(p1=p1, p3a=p3a, p3b=p3b, p5a=p5a, p5b=p5b, po=po)
    return kernel_params, raw


# ----------------------------------------------------------------------------
# Pure-JAX reference (mirrors the PyTorch forward, inference-mode BN), NCL, f32.
# ----------------------------------------------------------------------------
def _conv1d(x_ncl, w_oik, b, padding):
    y = jax.lax.conv_general_dilated(
        x_ncl, w_oik, window_strides=(1,), padding=[(padding, padding)],
        dimension_numbers=("NCH", "OIH", "NCH"))
    return y + b[None, :, None]


def _bn(x_ncl, p, eps):
    s = p["gamma"] / jnp.sqrt(p["var"] + eps)
    return (x_ncl - p["mean"][None, :, None]) * s[None, :, None] + \
        p["beta"][None, :, None]


def reference(x_ncl, raw, scale):
    def basic(x, p, pad, eps=0.001):
        y = _conv1d(x, p["w"], p["b"], pad)
        return jax.nn.relu(_bn(y, p, eps))

    b1 = basic(x_ncl, raw["p1"], 0)
    b3 = basic(basic(x_ncl, raw["p3a"], 0), raw["p3b"], 1)
    b5 = basic(basic(x_ncl, raw["p5a"], 0), raw["p5b"], 2)
    cat = jnp.concatenate([b1, b3, b5], axis=1)               # (N, 224, L)
    up = _conv1d(cat, raw["po"]["w"], raw["po"]["b"], 0)
    up = _bn(up, raw["po"], 1e-5)
    return jax.nn.relu(x_ncl * scale + up)


# ----------------------------------------------------------------------------
if __name__ == "__main__":
    N, Cin, L = 2, 4, 16
    scale = 0.5

    key = jax.random.PRNGKey(0)
    kx, kp = jax.random.split(key)
    x_ncl = jax.random.normal(kx, (N, Cin, L), jnp.float32)   # PyTorch NCL

    kernel_params, raw = build_params(kp, Cin)

    # channels-last for the kernel
    x_nlc = jnp.transpose(x_ncl, (0, 2, 1))                   # (N, L, Cin)
    out_nlc = inception_resnet_block_pallas(x_nlc, kernel_params, scale)
    out_ncl = jnp.transpose(out_nlc, (0, 2, 1))               # back to NCL
    out_ncl = jax.block_until_ready(out_ncl)

    ref = jax.block_until_ready(reference(x_ncl, raw, scale))
    # bf16 MXU inputs / bf16 x at the boundary (f32 accumulation) vs full-f32
    # reference => intentionally loose tolerance.
    np.testing.assert_allclose(np.asarray(out_ncl), np.asarray(ref),
                               rtol=5e-2, atol=5e-2)
    print("KERNEL_OK")
</pallas_src>

<mosaic_0001>
module attributes {stable_mosaic.version = 11 : i64} {
  func.func @_block_kernel(%arg0: i32, %arg1: memref<16x4xbf16, #tpu.memory_space<vmem>>, %arg2: memref<4x192xbf16, #tpu.memory_space<vmem>>, %arg3: memref<1x192xf32, #tpu.memory_space<vmem>>, %arg4: memref<128x160xbf16, #tpu.memory_space<vmem>>, %arg5: memref<128x160xbf16, #tpu.memory_space<vmem>>, %arg6: memref<128x160xbf16, #tpu.memory_space<vmem>>, %arg7: memref<128x160xbf16, #tpu.memory_space<vmem>>, %arg8: memref<1x160xf32, #tpu.memory_space<vmem>>, %arg9: memref<160x4xbf16, #tpu.memory_space<vmem>>, %arg10: memref<192x4xbf16, #tpu.memory_space<vmem>>, %arg11: memref<1x4xf32, #tpu.memory_space<vmem>>, %arg12: memref<16x4xf32, #tpu.memory_space<vmem>>) attributes {dimension_semantics = [#tpu.dimension_semantics<parallel>], iteration_bounds = array<i64: 2>, scalar_prefetch = 0 : i64, scratch_operands = 0 : i64, tpu.core_type = #tpu.core_type<tc>, window_params = [{transform_indices = @transform_0, window_bounds = array<i64: 16, 4>}, {pipeline_mode = #tpu.pipeline_mode<synchronous>, transform_indices = @transform_1, window_bounds = array<i64: 4, 192>}, {pipeline_mode = #tpu.pipeline_mode<synchronous>, transform_indices = @transform_2, window_bounds = array<i64: 1, 192>}, {pipeline_mode = #tpu.pipeline_mode<synchronous>, transform_indices = @transform_3, window_bounds = array<i64: 128, 160>}, {pipeline_mode = #tpu.pipeline_mode<synchronous>, transform_indices = @transform_4, window_bounds = array<i64: 128, 160>}, {pipeline_mode = #tpu.pipeline_mode<synchronous>, transform_indices = @transform_5, window_bounds = array<i64: 128, 160>}, {pipeline_mode = #tpu.pipeline_mode<synchronous>, transform_indices = @transform_6, window_bounds = array<i64: 128, 160>}, {pipeline_mode = #tpu.pipeline_mode<synchronous>, transform_indices = @transform_7, window_bounds = array<i64: 1, 160>}, {pipeline_mode = #tpu.pipeline_mode<synchronous>, transform_indices = @transform_8, window_bounds = array<i64: 160, 4>}, {pipeline_mode = #tpu.pipeline_mode<synchronous>, transform_indices = @transform_9, window_bounds = array<i64: 192, 4>}, {pipeline_mode = #tpu.pipeline_mode<synchronous>, transform_indices = @transform_10, window_bounds = array<i64: 1, 4>}, {transform_indices = @transform_11, window_bounds = array<i64: 16, 4>}]} {
    %c0 = arith.constant 0 : index
    %c0_0 = arith.constant 0 : index
    %0 = vector.load %arg1[%c0, %c0_0] : memref<16x4xbf16, #tpu.memory_space<vmem>>, vector<16x4xbf16>
    %c0_1 = arith.constant 0 : index
    %c0_2 = arith.constant 0 : index
    %1 = vector.load %arg2[%c0_1, %c0_2] : memref<4x192xbf16, #tpu.memory_space<vmem>>, vector<4x192xbf16>
    %cst = arith.constant dense<0.000000e+00> : vector<16x192xf32>
    %2 = tpu.matmul %0, %1, %cst {dimension_numbers = #tpu.dot_dimension_numbers<[1], [0], [0], [1], [0, 0, 1, 1], [], []>} : vector<16x4xbf16>, vector<4x192xbf16>, vector<16x192xf32> -> vector<16x192xf32>
    %c0_3 = arith.constant 0 : index
    %c0_4 = arith.constant 0 : index
    %3 = vector.load %arg3[%c0_3, %c0_4] : memref<1x192xf32, #tpu.memory_space<vmem>>, vector<1x192xf32>
    %4 = vector.broadcast %3 : vector<1x192xf32> to vector<16x192xf32>
    %5 = arith.addf %2, %4 : vector<16x192xf32>
    %cst_5 = arith.constant 0.000000e+00 : f32
    %6 = vector.broadcast %cst_5 : f32 to vector<16x192xf32>
    %7 = arith.maximumf %5, %6 : vector<16x192xf32>
    %8 = arith.truncf %7 : vector<16x192xf32> to vector<16x192xbf16>
    %9 = vector.extract_strided_slice %8 {offsets = [0, 0], sizes = [16, 128], strides = [1, 1]} : vector<16x192xbf16> to vector<16x128xbf16>
    %10 = vector.extract_strided_slice %7 {offsets = [0, 0], sizes = [16, 128], strides = [1, 1]} : vector<16x192xf32> to vector<16x128xf32>
    %11 = vector.extract_strided_slice %7 {offsets = [0, 64], sizes = [16, 64], strides = [1, 1]} : vector<16x192xf32> to vector<16x64xf32>
    %12 = tpu.iota {dimensions = array<i32: 0>} : vector<16x1xi32>
    %c16_i32 = arith.constant 16 : i32
    %c0_i32 = arith.constant 0 : i32
    %13 = arith.cmpi eq, %c16_i32, %c0_i32 : i32
    %c1_i32 = arith.constant 1 : i32
    %14 = arith.select %13, %c1_i32, %c16_i32 : i32
    %15 = vector.broadcast %14 : i32 to vector<16x1xi32>
    %16 = arith.remsi %12, %15 : vector<16x1xi32>
    %c0_i32_6 = arith.constant 0 : i32
    %17 = vector.broadcast %c0_i32_6 : i32 to vector<16x1xi32>
    %18 = arith.cmpi ne, %16, %17 : vector<16x1xi32>
    %c0_i32_7 = arith.constant 0 : i32
    %19 = vector.broadcast %c0_i32_7 : i32 to vector<16x1xi32>
    %20 = arith.cmpi slt, %16, %19 : vector<16x1xi32>
    %c0_i32_8 = arith.constant 0 : i32
    %21 = arith.cmpi slt, %14, %c0_i32_8 : i32
    %22 = vector.broadcast %21 : i1 to vector<16x1xi1>
    %23 = vector.broadcast %22 : vector<16x1xi1> to vector<16x1xi1>
    %24 = arith.xori %20, %23 : vector<16x1xi1>
    %25 = arith.andi %24, %18 : vector<16x1xi1>
    %26 = vector.broadcast %14 : i32 to vector<16x1xi32>
    %27 = arith.addi %16, %26 : vector<16x1xi32>
    %28 = arith.select %25, %27, %16 : vector<16x1xi1>, vector<16x1xi32>
    %c0_9 = arith.constant 0 : index
    %c0_10 = arith.constant 0 : index
    %29 = vector.load %arg4[%c0_9, %c0_10] : memref<128x160xbf16, #tpu.memory_space<vmem>>, vector<128x160xbf16>
    %cst_11 = arith.constant dense<0.000000e+00> : vector<16x160xf32>
    %30 = tpu.matmul %9, %29, %cst_11 {dimension_numbers = #tpu.dot_dimension_numbers<[1], [0], [0], [1], [0, 0, 1, 1], [], []>} : vector<16x128xbf16>, vector<128x160xbf16>, vector<16x160xf32> -> vector<16x160xf32>
    %c0_12 = arith.constant 0 : index
    %c0_13 = arith.constant 0 : index
    %31 = vector.load %arg8[%c0_12, %c0_13] : memref<1x160xf32, #tpu.memory_space<vmem>>, vector<1x160xf32>
    %32 = vector.broadcast %31 : vector<1x160xf32> to vector<16x160xf32>
    %33 = arith.addf %30, %32 : vector<16x160xf32>
    %c1_i32_14 = arith.constant 1 : i32
    %34 = tpu.dynamic_rotate %10 by %c1_i32_14 dim 0 : vector<16x128xf32>, i32 -> vector<16x128xf32>
    %c-1_i32 = arith.constant -1 : i32
    %35 = vector.broadcast %c-1_i32 : i32 to vector<16x1xi32>
    %36 = arith.addi %28, %35 : vector<16x1xi32>
    %c0_i32_15 = arith.constant 0 : i32
    %37 = vector.broadcast %c0_i32_15 : i32 to vector<16x1xi32>
    %38 = arith.cmpi sge, %36, %37 : vector<16x1xi32>
    %c-1_i32_16 = arith.constant -1 : i32
    %39 = vector.broadcast %c-1_i32_16 : i32 to vector<16x1xi32>
    %40 = arith.addi %28, %39 : vector<16x1xi32>
    %c16_i32_17 = arith.constant 16 : i32
    %41 = vector.broadcast %c16_i32_17 : i32 to vector<16x1xi32>
    %42 = arith.cmpi slt, %40, %41 : vector<16x1xi32>
    %43 = arith.andi %38, %42 : vector<16x1xi1>
    %cst_18 = arith.constant 0.000000e+00 : f32
    %44 = vector.shape_cast %43 : vector<16x1xi1> to vector<16x1xi1>
    %45 = vector.broadcast %44 : vector<16x1xi1> to vector<16x128xi1>
    %46 = vector.broadcast %cst_18 : f32 to vector<16x128xf32>
    %47 = arith.select %45, %34, %46 : vector<16x128xi1>, vector<16x128xf32>
    %48 = arith.truncf %47 : vector<16x128xf32> to vector<16x128xbf16>
    %c0_19 = arith.constant 0 : index
    %c0_20 = arith.constant 0 : index
    %49 = vector.load %arg5[%c0_19, %c0_20] : memref<128x160xbf16, #tpu.memory_space<vmem>>, vector<128x160xbf16>
    %cst_21 = arith.constant dense<0.000000e+00> : vector<16x160xf32>
    %50 = tpu.matmul %48, %49, %cst_21 {dimension_numbers = #tpu.dot_dimension_numbers<[1], [0], [0], [1], [0, 0, 1, 1], [], []>} : vector<16x128xbf16>, vector<128x160xbf16>, vector<16x160xf32> -> vector<16x160xf32>
    %51 = arith.addf %33, %50 : vector<16x160xf32>
    %c15_i32 = arith.constant 15 : i32
    %52 = tpu.dynamic_rotate %10 by %c15_i32 dim 0 : vector<16x128xf32>, i32 -> vector<16x128xf32>
    %c1_i32_22 = arith.constant 1 : i32
    %53 = vector.broadcast %c1_i32_22 : i32 to vector<16x1xi32>
    %54 = arith.addi %28, %53 : vector<16x1xi32>
    %c0_i32_23 = arith.constant 0 : i32
    %55 = vector.broadcast %c0_i32_23 : i32 to vector<16x1xi32>
    %56 = arith.cmpi sge, %54, %55 : vector<16x1xi32>
    %c1_i32_24 = arith.constant 1 : i32
    %57 = vector.broadcast %c1_i32_24 : i32 to vector<16x1xi32>
    %58 = arith.addi %28, %57 : vector<16x1xi32>
    %c16_i32_25 = arith.constant 16 : i32
    %59 = vector.broadcast %c16_i32_25 : i32 to vector<16x1xi32>
    %60 = arith.cmpi slt, %58, %59 : vector<16x1xi32>
    %61 = arith.andi %56, %60 : vector<16x1xi1>
    %cst_26 = arith.constant 0.000000e+00 : f32
    %62 = vector.shape_cast %61 : vector<16x1xi1> to vector<16x1xi1>
    %63 = vector.broadcast %62 : vector<16x1xi1> to vector<16x128xi1>
    %64 = vector.broadcast %cst_26 : f32 to vector<16x128xf32>
    %65 = arith.select %63, %52, %64 : vector<16x128xi1>, vector<16x128xf32>
    %66 = arith.truncf %65 : vector<16x128xf32> to vector<16x128xbf16>
    %c0_27 = arith.constant 0 : index
    %c0_28 = arith.constant 0 : index
    %67 = vector.load %arg6[%c0_27, %c0_28] : memref<128x160xbf16, #tpu.memory_space<vmem>>, vector<128x160xbf16>
    %cst_29 = arith.constant dense<0.000000e+00> : vector<16x160xf32>
    %68 = tpu.matmul %66, %67, %cst_29 {dimension_numbers = #tpu.dot_dimension_numbers<[1], [0], [0], [1], [0, 0, 1, 1], [], []>} : vector<16x128xbf16>, vector<128x160xbf16>, vector<16x160xf32> -> vector<16x160xf32>
    %69 = arith.addf %51, %68 : vector<16x160xf32>
    %c14_i32 = arith.constant 14 : i32
    %70 = tpu.dynamic_rotate %11 by %c14_i32 dim 0 : vector<16x64xf32>, i32 -> vector<16x64xf32>
    %c2_i32 = arith.constant 2 : i32
    %71 = vector.broadcast %c2_i32 : i32 to vector<16x1xi32>
    %72 = arith.addi %28, %71 : vector<16x1xi32>
    %c0_i32_30 = arith.constant 0 : i32
    %73 = vector.broadcast %c0_i32_30 : i32 to vector<16x1xi32>
    %74 = arith.cmpi sge, %72, %73 : vector<16x1xi32>
    %c2_i32_31 = arith.constant 2 : i32
    %75 = vector.broadcast %c2_i32_31 : i32 to vector<16x1xi32>
    %76 = arith.addi %28, %75 : vector<16x1xi32>
    %c16_i32_32 = arith.constant 16 : i32
    %77 = vector.broadcast %c16_i32_32 : i32 to vector<16x1xi32>
    %78 = arith.cmpi slt, %76, %77 : vector<16x1xi32>
    %79 = arith.andi %74, %78 : vector<16x1xi1>
    %cst_33 = arith.constant 0.000000e+00 : f32
    %80 = vector.shape_cast %79 : vector<16x1xi1> to vector<16x1xi1>
    %81 = vector.broadcast %80 : vector<16x1xi1> to vector<16x64xi1>
    %82 = vector.broadcast %cst_33 : f32 to vector<16x64xf32>
    %83 = arith.select %81, %70, %82 : vector<16x64xi1>, vector<16x64xf32>
    %84 = arith.truncf %83 : vector<16x64xf32> to vector<16x64xbf16>
    %c2_i32_34 = arith.constant 2 : i32
    %85 = tpu.dynamic_rotate %11 by %c2_i32_34 dim 0 : vector<16x64xf32>, i32 -> vector<16x64xf32>
    %c-2_i32 = arith.constant -2 : i32
    %86 = vector.broadcast %c-2_i32 : i32 to vector<16x1xi32>
    %87 = arith.addi %28, %86 : vector<16x1xi32>
    %c0_i32_35 = arith.constant 0 : i32
    %88 = vector.broadcast %c0_i32_35 : i32 to vector<16x1xi32>
    %89 = arith.cmpi sge, %87, %88 : vector<16x1xi32>
    %c-2_i32_36 = arith.constant -2 : i32
    %90 = vector.broadcast %c-2_i32_36 : i32 to vector<16x1xi32>
    %91 = arith.addi %28, %90 : vector<16x1xi32>
    %c16_i32_37 = arith.constant 16 : i32
    %92 = vector.broadcast %c16_i32_37 : i32 to vector<16x1xi32>
    %93 = arith.cmpi slt, %91, %92 : vector<16x1xi32>
    %94 = arith.andi %89, %93 : vector<16x1xi1>
    %cst_38 = arith.constant 0.000000e+00 : f32
    %95 = vector.shape_cast %94 : vector<16x1xi1> to vector<16x1xi1>
    %96 = vector.broadcast %95 : vector<16x1xi1> to vector<16x64xi1>
    %97 = vector.broadcast %cst_38 : f32 to vector<16x64xf32>
    %98 = arith.select %96, %85, %97 : vector<16x64xi1>, vector<16x64xf32>
    %99 = arith.truncf %98 : vector<16x64xf32> to vector<16x64xbf16>
    %100 = tpu.concatenate %84, %99 in 1 : vector<16x64xbf16>, vector<16x64xbf16> -> vector<16x128xbf16>
    %c0_39 = arith.constant 0 : index
    %c0_40 = arith.constant 0 : index
    %101 = vector.load %arg7[%c0_39, %c0_40] : memref<128x160xbf16, #tpu.memory_space<vmem>>, vector<128x160xbf16>
    %cst_41 = arith.constant dense<0.000000e+00> : vector<16x160xf32>
    %102 = tpu.matmul %100, %101, %cst_41 {dimension_numbers = #tpu.dot_dimension_numbers<[1], [0], [0], [1], [0, 0, 1, 1], [], []>} : vector<16x128xbf16>, vector<128x160xbf16>, vector<16x160xf32> -> vector<16x160xf32>
    %103 = arith.addf %69, %102 : vector<16x160xf32>
    %cst_42 = arith.constant 0.000000e+00 : f32
    %104 = vector.broadcast %cst_42 : f32 to vector<16x160xf32>
    %105 = arith.maximumf %103, %104 : vector<16x160xf32>
    %106 = arith.truncf %105 : vector<16x160xf32> to vector<16x160xbf16>
    %c0_43 = arith.constant 0 : index
    %c0_44 = arith.constant 0 : index
    %107 = vector.load %arg9[%c0_43, %c0_44] : memref<160x4xbf16, #tpu.memory_space<vmem>>, vector<160x4xbf16>
    %cst_45 = arith.constant dense<0.000000e+00> : vector<16x4xf32>
    %108 = tpu.matmul %106, %107, %cst_45 {dimension_numbers = #tpu.dot_dimension_numbers<[1], [0], [0], [1], [0, 0, 1, 1], [], []>} : vector<16x160xbf16>, vector<160x4xbf16>, vector<16x4xf32> -> vector<16x4xf32>
    %c0_46 = arith.constant 0 : index
    %c0_47 = arith.constant 0 : index
    %109 = vector.load %arg10[%c0_46, %c0_47] : memref<192x4xbf16, #tpu.memory_space<vmem>>, vector<192x4xbf16>
    %cst_48 = arith.constant dense<0.000000e+00> : vector<16x4xf32>
    %110 = tpu.matmul %8, %109, %cst_48 {dimension_numbers = #tpu.dot_dimension_numbers<[1], [0], [0], [1], [0, 0, 1, 1], [], []>} : vector<16x192xbf16>, vector<192x4xbf16>, vector<16x4xf32> -> vector<16x4xf32>
    %111 = arith.addf %108, %110 : vector<16x4xf32>
    %c0_49 = arith.constant 0 : index
    %c0_50 = arith.constant 0 : index
    %112 = vector.load %arg11[%c0_49, %c0_50] : memref<1x4xf32, #tpu.memory_space<vmem>>, vector<1x4xf32>
    %113 = vector.broadcast %112 : vector<1x4xf32> to vector<16x4xf32>
    %114 = arith.addf %111, %113 : vector<16x4xf32>
    %115 = arith.extf %0 : vector<16x4xbf16> to vector<16x4xf32>
    %cst_51 = arith.constant 5.000000e-01 : f32
    %116 = vector.broadcast %cst_51 : f32 to vector<16x4xf32>
    %117 = arith.mulf %115, %116 : vector<16x4xf32>
    %118 = arith.addf %117, %114 : vector<16x4xf32>
    %cst_52 = arith.constant 0.000000e+00 : f32
    %119 = vector.broadcast %cst_52 : f32 to vector<16x4xf32>
    %120 = arith.maximumf %118, %119 : vector<16x4xf32>
    %c0_53 = arith.constant 0 : index
    %c0_54 = arith.constant 0 : index
    %121 = vector.load %arg12[%c0_53, %c0_54] : memref<16x4xf32, #tpu.memory_space<vmem>>, vector<16x4xf32>
    tpu.vector_store %arg12[%c0_53, %c0_54], %120 {strides = array<i32>} : memref<16x4xf32, #tpu.memory_space<vmem>>, vector<16x4xf32>,
    return
  }
  func.func @transform_0(%arg0: i32) -> (i32, i32) {
    %c0_i32 = arith.constant 0 : i32
    %c0_i32_0 = arith.constant 0 : i32
    return %arg0, %c0_i32 : i32, i32
  }
  func.func @transform_1(%arg0: i32) -> (i32, i32) {
    %c0_i32 = arith.constant 0 : i32
    %c0_i32_0 = arith.constant 0 : i32
    %c0_i32_1 = arith.constant 0 : i32
    return %c0_i32, %c0_i32_0 : i32, i32
  }
  func.func @transform_2(%arg0: i32) -> (i32, i32) {
    %c0_i32 = arith.constant 0 : i32
    %c0_i32_0 = arith.constant 0 : i32
    %c0_i32_1 = arith.constant 0 : i32
    return %c0_i32, %c0_i32_0 : i32, i32
  }
  func.func @transform_3(%arg0: i32) -> (i32, i32) {
    %c0_i32 = arith.constant 0 : i32
    %c0_i32_0 = arith.constant 0 : i32
    %c0_i32_1 = arith.constant 0 : i32
    return %c0_i32, %c0_i32_0 : i32, i32
  }
  func.func @transform_4(%arg0: i32) -> (i32, i32) {
    %c0_i32 = arith.constant 0 : i32
    %c0_i32_0 = arith.constant 0 : i32
    %c0_i32_1 = arith.constant 0 : i32
    return %c0_i32, %c0_i32_0 : i32, i32
  }
  func.func @transform_5(%arg0: i32) -> (i32, i32) {
    %c0_i32 = arith.constant 0 : i32
    %c0_i32_0 = arith.constant 0 : i32
    %c0_i32_1 = arith.constant 0 : i32
    return %c0_i32, %c0_i32_0 : i32, i32
  }
  func.func @transform_6(%arg0: i32) -> (i32, i32) {
    %c0_i32 = arith.constant 0 : i32
    %c0_i32_0 = arith.constant 0 : i32
    %c0_i32_1 = arith.constant 0 : i32
    return %c0_i32, %c0_i32_0 : i32, i32
  }
  func.func @transform_7(%arg0: i32) -> (i32, i32) {
    %c0_i32 = arith.constant 0 : i32
    %c0_i32_0 = arith.constant 0 : i32
    %c0_i32_1 = arith.constant 0 : i32
    return %c0_i32, %c0_i32_0 : i32, i32
  }
  func.func @transform_8(%arg0: i32) -> (i32, i32) {
    %c0_i32 = arith.constant 0 : i32
    %c0_i32_0 = arith.constant 0 : i32
    %c0_i32_1 = arith.constant 0 : i32
    return %c0_i32, %c0_i32_0 : i32, i32
  }
  func.func @transform_9(%arg0: i32) -> (i32, i32) {
    %c0_i32 = arith.constant 0 : i32
    %c0_i32_0 = arith.constant 0 : i32
    %c0_i32_1 = arith.constant 0 : i32
    return %c0_i32, %c0_i32_0 : i32, i32
  }
  func.func @transform_10(%arg0: i32) -> (i32, i32) {
    %c0_i32 = arith.constant 0 : i32
    %c0_i32_0 = arith.constant 0 : i32
    %c0_i32_1 = arith.constant 0 : i32
    return %c0_i32, %c0_i32_0 : i32, i32
  }
  func.func @transform_11(%arg0: i32) -> (i32, i32) {
    %c0_i32 = arith.constant 0 : i32
    %c0_i32_0 = arith.constant 0 : i32
    return %arg0, %c0_i32 : i32, i32
  }
}

</mosaic_0001>

<llo_original>
// kernel: tpu_custom_call.1
$region0: #{tpu_custom_call.1}
  #allocation0 [shape = 'u32[]', space=smem, size = 0x4, offset = 0x4, fixed_abs, tag = 'smem constant byte address 0x4 - core index']
  #allocation1 [shape = 'u32[144,128]{1,0:T(1,128)}', space=vmem, size = 0x12000, scoped, tag = 'internal scratch']
  %s0 = inlined_call_operand.vmem [shape: bf16[32,4], index: 0, kind: input, shape index: {}]
  %s1 = inlined_call_operand.vmem [shape: bf16[4,192], index: 1, kind: input, shape index: {}]
  %s2 = inlined_call_operand.vmem [shape: f32[1,192], index: 2, kind: input, shape index: {}]
  %s3 = inlined_call_operand.vmem [shape: bf16[128,160], index: 3, kind: input, shape index: {}]
  %s4 = inlined_call_operand.vmem [shape: bf16[128,160], index: 4, kind: input, shape index: {}]
  %s5 = inlined_call_operand.vmem [shape: bf16[128,160], index: 5, kind: input, shape index: {}]
  %s6 = inlined_call_operand.vmem [shape: bf16[128,160], index: 6, kind: input, shape index: {}]
  %s7 = inlined_call_operand.vmem [shape: f32[1,160], index: 7, kind: input, shape index: {}]
  %s8 = inlined_call_operand.vmem [shape: bf16[160,4], index: 8, kind: input, shape index: {}]
  %s9 = inlined_call_operand.vmem [shape: bf16[192,4], index: 9, kind: input, shape index: {}]
  %s10 = inlined_call_operand.vmem [shape: f32[1,4], index: 10, kind: input, shape index: {}]
  %s11 = inlined_call_operand.vmem [shape: f32[32,4], index: 11, kind: output, shape index: {}]
  %s12 = sld [smem:[#allocation0]]
  $region77: #{tpu_custom_call.1} parent=0
    _
  %s14 = ssub.s32 1, %s12
  %s15 = scalar_select 0, %s14, %s12
  loop: start=0, step=1, limit=4
  $region2: #{tpu_custom_call.1} parent=0 // loop_pre_header
    _
  $region3: #{tpu_custom_call.1} parent=0 // loop_header
    %s17 = sphi 0, %s21
    %p18 = scmp.ge.s32.totalorder %s17, 4
    %s27 = sphi 0, %s29
    %s30 = sphi 0, %s27
    %s31 = sphi 0, %s30
    %s47 = sphi 0, %s31
    %s51 = sphi 0, %s51
    %s53 = sphi 0, %s51
    %s54 = sphi 0, %s53
    %s68 = sphi 0, %s54
    %s72 = sphi 0, %s72
    %s74 = sphi 0, %s72
    %s75 = sphi 0, %s74
    %s89 = sphi 0, %s75
    %s93 = sphi 0, %s93
    %s95 = sphi 0, %s93
    %s96 = sphi 0, %s95
    %s110 = sphi 0, %s96
    %s114 = sphi 0, %s114
    %s116 = sphi 0, %s114
    %s117 = sphi 0, %s116
    %s131 = sphi 0, %s117
    %s135 = sphi 0, %s135
    %s137 = sphi 0, %s135
    %s138 = sphi 0, %s137
    %s152 = sphi 0, %s138
    %s156 = sphi 0, %s156
    %s158 = sphi 0, %s156
    %s159 = sphi 0, %s158
    %s173 = sphi 0, %s159
    %s177 = sphi 0, %s177
    %s179 = sphi 0, %s177
    %s180 = sphi 0, %s179
    %s194 = sphi 0, %s180
    %s198 = sphi 0, %s198
    %s200 = sphi 0, %s198
    %s201 = sphi 0, %s200
    %s215 = sphi 0, %s201
    %s219 = sphi 0, %s219
    %s221 = sphi 0, %s219
    %s222 = sphi 0, %s221
    %s236 = sphi 0, %s222
    %s240 = sphi 0, %s240
    %s242 = sphi 0, %s240
    %s243 = sphi 0, %s242
    %s257 = sphi 0, %s243
    %s263 = sphi 0, %s265
    %s266 = sphi 0, %s263
    %s267 = sphi 0, %s266
    %s283 = sphi 0, %s267
  $region4: #{tpu_custom_call.1} parent=0 // loop_header_branch
    %20 = sbr.rel (%p18) target = $region8
  $region5: #{tpu_custom_call.1} parent=0 // loop_body
    %s22 = ssub.s32 %s17, 1
    %s23 = ssub.s32 %s17, 2
    %s24 = sadd.s32 %s17, 1
    %s25 = ssub.s32 %s17, %s24
    %p26 = scmp.eq.s32.totalorder %s25, 0
    %s28 = sadd.s32 %s27, 1
    %s29 = scalar_select %p26, %s27, %s28
    %p32 = pneg %p26
    %p33 = scmp.eq.s32.totalorder %s17, 1
    %p34 = por %p32, %p33
    %p35 = scmp.ne.s32.totalorder %s27, %s30
    %p36 = scmp.eq.s32.totalorder %s17, 0
    %p37 = por %p35, %p36
    %p38 = scmp.ne.s32.totalorder %s27, %s30
    %p39 = scmp.eq.s32.totalorder %s22, 1
    %p40 = por %p38, %p39
    %p41 = scmp.ne.s32.totalorder %s30, %s31
    %p42 = scmp.eq.s32.totalorder %s22, 0
    %p43 = por %p41, %p42
    %p44 = scmp.ne.s32.totalorder %s30, %s31
    %p45 = scmp.eq.s32.totalorder %s23, 1
    %p46 = por %p44, %p45
    %p48 = scmp.ne.s32.totalorder %s31, %s47
    %p49 = scmp.eq.s32.totalorder %s23, 0
    %p50 = por %p48, %p49
    %s52 = sadd.s32 %s51, 1
    %p55 = scmp.eq.s32.totalorder %s17, 1
    %p56 = scmp.ne.s32.totalorder %s51, %s53
    %p57 = scmp.eq.s32.totalorder %s17, 0
    %p58 = por %p56, %p57
    %p59 = scmp.ne.s32.totalorder %s51, %s53
    %p60 = scmp.eq.s32.totalorder %s22, 1
    %p61 = por %p59, %p60
    %p62 = scmp.ne.s32.totalorder %s53, %s54
    %p63 = scmp.eq.s32.totalorder %s22, 0
    %p64 = por %p62, %p63
    %p65 = scmp.ne.s32.totalorder %s53, %s54
    %p66 = scmp.eq.s32.totalorder %s23, 1
    %p67 = por %p65, %p66
    %p69 = scmp.ne.s32.totalorder %s54, %s68
    %p70 = scmp.eq.s32.totalorder %s23, 0
    %p71 = por %p69, %p70
    %s73 = sadd.s32 %s72, 1
    %p76 = scmp.eq.s32.totalorder %s17, 1
    %p77 = scmp.ne.s32.totalorder %s72, %s74
    %p78 = scmp.eq.s32.totalorder %s17, 0
    %p79 = por %p77, %p78
    %p80 = scmp.ne.s32.totalorder %s72, %s74
    %p81 = scmp.eq.s32.totalorder %s22, 1
    %p82 = por %p80, %p81
    %p83 = scmp.ne.s32.totalorder %s74, %s75
    %p84 = scmp.eq.s32.totalorder %s22, 0
    %p85 = por %p83, %p84
    %p86 = scmp.ne.s32.totalorder %s74, %s75
    %p87 = scmp.eq.s32.totalorder %s23, 1
    %p88 = por %p86, %p87
    %p90 = scmp.ne.s32.totalorder %s75, %s89
    %p91 = scmp.eq.s32.totalorder %s23, 0
    %p92 = por %p90, %p91
    %s94 = sadd.s32 %s93, 1
    %p97 = scmp.eq.s32.totalorder %s17, 1
    %p98 = scmp.ne.s32.totalorder %s93, %s95
    %p99 = scmp.eq.s32.totalorder %s17, 0
    %p100 = por %p98, %p99
    %p101 = scmp.ne.s32.totalorder %s93, %s95
    %p102 = scmp.eq.s32.totalorder %s22, 1
    %p103 = por %p101, %p102
    %p104 = scmp.ne.s32.totalorder %s95, %s96
    %p105 = scmp.eq.s32.totalorder %s22, 0
    %p106 = por %p104, %p105
    %p107 = scmp.ne.s32.totalorder %s95, %s96
    %p108 = scmp.eq.s32.totalorder %s23, 1
    %p109 = por %p107, %p108
    %p111 = scmp.ne.s32.totalorder %s96, %s110
    %p112 = scmp.eq.s32.totalorder %s23, 0
    %p113 = por %p111, %p112
    %s115 = sadd.s32 %s114, 1
    %p118 = scmp.eq.s32.totalorder %s17, 1
    %p119 = scmp.ne.s32.totalorder %s114, %s116
    %p120 = scmp.eq.s32.totalorder %s17, 0
    %p121 = por %p119, %p120
    %p122 = scmp.ne.s32.totalorder %s114, %s116
    %p123 = scmp.eq.s32.totalorder %s22, 1
    %p124 = por %p122, %p123
    %p125 = scmp.ne.s32.totalorder %s116, %s117
    %p126 = scmp.eq.s32.totalorder %s22, 0
    %p127 = por %p125, %p126
    %p128 = scmp.ne.s32.totalorder %s116, %s117
    %p129 = scmp.eq.s32.totalorder %s23, 1
    %p130 = por %p128, %p129
    %p132 = scmp.ne.s32.totalorder %s117, %s131
    %p133 = scmp.eq.s32.totalorder %s23, 0
    %p134 = por %p132, %p133
    %s136 = sadd.s32 %s135, 1
    %p139 = scmp.eq.s32.totalorder %s17, 1
    %p140 = scmp.ne.s32.totalorder %s135, %s137
    %p141 = scmp.eq.s32.totalorder %s17, 0
    %p142 = por %p140, %p141
    %p143 = scmp.ne.s32.totalorder %s135, %s137
    %p144 = scmp.eq.s32.totalorder %s22, 1
    %p145 = por %p143, %p144
    %p146 = scmp.ne.s32.totalorder %s137, %s138
    %p147 = scmp.eq.s32.totalorder %s22, 0
    %p148 = por %p146, %p147
    %p149 = scmp.ne.s32.totalorder %s137, %s138
    %p150 = scmp.eq.s32.totalorder %s23, 1
    %p151 = por %p149, %p150
    %p153 = scmp.ne.s32.totalorder %s138, %s152
    %p154 = scmp.eq.s32.totalorder %s23, 0
    %p155 = por %p153, %p154
    %s157 = sadd.s32 %s156, 1
    %p160 = scmp.eq.s32.totalorder %s17, 1
    %p161 = scmp.ne.s32.totalorder %s156, %s158
    %p162 = scmp.eq.s32.totalorder %s17, 0
    %p163 = por %p161, %p162
    %p164 = scmp.ne.s32.totalorder %s156, %s158
    %p165 = scmp.eq.s32.totalorder %s22, 1
    %p166 = por %p164, %p165
    %p167 = scmp.ne.s32.totalorder %s158, %s159
    %p168 = scmp.eq.s32.totalorder %s22, 0
    %p169 = por %p167, %p168
    %p170 = scmp.ne.s32.totalorder %s158, %s159
    %p171 = scmp.eq.s32.totalorder %s23, 1
    %p172 = por %p170, %p171
    %p174 = scmp.ne.s32.totalorder %s159, %s173
    %p175 = scmp.eq.s32.totalorder %s23, 0
    %p176 = por %p174, %p175
    %s178 = sadd.s32 %s177, 1
    %p181 = scmp.eq.s32.totalorder %s17, 1
    %p182 = scmp.ne.s32.totalorder %s177, %s179
    %p183 = scmp.eq.s32.totalorder %s17, 0
    %p184 = por %p182, %p183
    %p185 = scmp.ne.s32.totalorder %s177, %s179
    %p186 = scmp.eq.s32.totalorder %s22, 1
    %p187 = por %p185, %p186
    %p188 = scmp.ne.s32.totalorder %s179, %s180
    %p189 = scmp.eq.s32.totalorder %s22, 0
    %p190 = por %p188, %p189
    %p191 = scmp.ne.s32.totalorder %s179, %s180
    %p192 = scmp.eq.s32.totalorder %s23, 1
    %p193 = por %p191, %p192
    %p195 = scmp.ne.s32.totalorder %s180, %s194
    %p196 = scmp.eq.s32.totalorder %s23, 0
    %p197 = por %p195, %p196
    %s199 = sadd.s32 %s198, 1
    %p202 = scmp.eq.s32.totalorder %s17, 1
    %p203 = scmp.ne.s32.totalorder %s198, %s200
    %p204 = scmp.eq.s32.totalorder %s17, 0
    %p205 = por %p203, %p204
    %p206 = scmp.ne.s32.totalorder %s198, %s200
    %p207 = scmp.eq.s32.totalorder %s22, 1
    %p208 = por %p206, %p207
    %p209 = scmp.ne.s32.totalorder %s200, %s201
    %p210 = scmp.eq.s32.totalorder %s22, 0
    %p211 = por %p209, %p210
    %p212 = scmp.ne.s32.totalorder %s200, %s201
    %p213 = scmp.eq.s32.totalorder %s23, 1
    %p214 = por %p212, %p213
    %p216 = scmp.ne.s32.totalorder %s201, %s215
    %p217 = scmp.eq.s32.totalorder %s23, 0
    %p218 = por %p216, %p217
    %s220 = sadd.s32 %s219, 1
    %p223 = scmp.eq.s32.totalorder %s17, 1
    %p224 = scmp.ne.s32.totalorder %s219, %s221
    %p225 = scmp.eq.s32.totalorder %s17, 0
    %p226 = por %p224, %p225
    %p227 = scmp.ne.s32.totalorder %s219, %s221
    %p228 = scmp.eq.s32.totalorder %s22, 1
    %p229 = por %p227, %p228
    %p230 = scmp.ne.s32.totalorder %s221, %s222
    %p231 = scmp.eq.s32.totalorder %s22, 0
    %p232 = por %p230, %p231
    %p233 = scmp.ne.s32.totalorder %s221, %s222
    %p234 = scmp.eq.s32.totalorder %s23, 1
    %p235 = por %p233, %p234
    %p237 = scmp.ne.s32.totalorder %s222, %s236
    %p238 = scmp.eq.s32.totalorder %s23, 0
    %p239 = por %p237, %p238
    %s241 = sadd.s32 %s240, 1
    %p244 = scmp.eq.s32.totalorder %s17, 1
    %p245 = scmp.ne.s32.totalorder %s240, %s242
    %p246 = scmp.eq.s32.totalorder %s17, 0
    %p247 = por %p245, %p246
    %p248 = scmp.ne.s32.totalorder %s240, %s242
    %p249 = scmp.eq.s32.totalorder %s22, 1
    %p250 = por %p248, %p249
    %p251 = scmp.ne.s32.totalorder %s242, %s243
    %p252 = scmp.eq.s32.totalorder %s22, 0
    %p253 = por %p251, %p252
    %p254 = scmp.ne.s32.totalorder %s242, %s243
    %p255 = scmp.eq.s32.totalorder %s23, 1
    %p256 = por %p254, %p255
    %p258 = scmp.ne.s32.totalorder %s243, %s257
    %p259 = scmp.eq.s32.totalorder %s23, 0
    %p260 = por %p258, %p259
    %s261 = ssub.s32 %s17, %s24
    %p262 = scmp.eq.s32.totalorder %s261, 0
    %s264 = sadd.s32 %s263, 1
    %s265 = scalar_select %p262, %s263, %s264
    %p268 = pneg %p262
    %p269 = scmp.eq.s32.totalorder %s17, 1
    %p270 = por %p268, %p269
    %p271 = scmp.ne.s32.totalorder %s263, %s266
    %p272 = scmp.eq.s32.totalorder %s17, 0
    %p273 = por %p271, %p272
    %p274 = scmp.ne.s32.totalorder %s263, %s266
    %p275 = scmp.eq.s32.totalorder %s22, 1
    %p276 = por %p274, %p275
    %p277 = scmp.ne.s32.totalorder %s266, %s267
    %p278 = scmp.eq.s32.totalorder %s22, 0
    %p279 = por %p277, %p278
    %p280 = scmp.ne.s32.totalorder %s266, %s267
    %p281 = scmp.eq.s32.totalorder %s23, 1
    %p282 = por %p280, %p281
    %p284 = scmp.ne.s32.totalorder %s267, %s283
    %p285 = scmp.eq.s32.totalorder %s23, 0
    %p286 = por %p284, %p285
    %p287 = scmp.le.s32.totalorder 1, %s17
    %p288 = scmp.lt.s32.totalorder %s17, 3
    %p289 = pnand %p287, %p288
    %p290 = pneg %p289
    // Predicated region
    $region9: #{tpu_custom_call.1} parent=5 // pred_check
      _
    $region10: #{tpu_custom_call.1} parent=5 // pred_check_branch
      %292 = sbr.rel (%p289) target = $region12
    $region11: #{tpu_custom_call.1} parent=5 // pred_region
      %s293 = ssub.s32 %s17, 1
      // Predicated region
      $region13: #{tpu_custom_call.1} parent=11 // pred_check
        %p294 = pneg %p64
      $region14: #{tpu_custom_call.1} parent=11 // pred_check_branch
        %296 = sbr.rel (%p294) target = $region16
      $region15: #{tpu_custom_call.1} parent=11 // pred_region
        _
      $region16: #{tpu_custom_call.1} parent=11 // pred_fallthru
        _
      // Predicated region
      $region17: #{tpu_custom_call.1} parent=11 // pred_check
        %p297 = pneg %p85
      $region18: #{tpu_custom_call.1} parent=11 // pred_check_branch
        %299 = sbr.rel (%p297) target = $region20
      $region19: #{tpu_custom_call.1} parent=11 // pred_region
        _
      $region20: #{tpu_custom_call.1} parent=11 // pred_fallthru
        _
      // Predicated region
      $region21: #{tpu_custom_call.1} parent=11 // pred_check
        %p300 = pneg %p106
      $region22: #{tpu_custom_call.1} parent=11 // pred_check_branch
        %302 = sbr.rel (%p300) target = $region24
      $region23: #{tpu_custom_call.1} parent=11 // pred_region
        _
      $region24: #{tpu_custom_call.1} parent=11 // pred_fallthru
        _
      // Predicated region
      $region25: #{tpu_custom_call.1} parent=11 // pred_check
        %p303 = pneg %p127
      $region26: #{tpu_custom_call.1} parent=11 // pred_check_branch
        %305 = sbr.rel (%p303) target = $region28
      $region27: #{tpu_custom_call.1} parent=11 // pred_region
        _
      $region28: #{tpu_custom_call.1} parent=11 // pred_fallthru
        _
      // Predicated region
      $region29: #{tpu_custom_call.1} parent=11 // pred_check
        %p306 = pneg %p148
      $region30: #{tpu_custom_call.1} parent=11 // pred_check_branch
        %308 = sbr.rel (%p306) target = $region32
      $region31: #{tpu_custom_call.1} parent=11 // pred_region
        _
      $region32: #{tpu_custom_call.1} parent=11 // pred_fallthru
        _
      // Predicated region
      $region33: #{tpu_custom_call.1} parent=11 // pred_check
        %p309 = pneg %p169
      $region34: #{tpu_custom_call.1} parent=11 // pred_check_branch
        %311 = sbr.rel (%p309) target = $region36
      $region35: #{tpu_custom_call.1} parent=11 // pred_region
        _
      $region36: #{tpu_custom_call.1} parent=11 // pred_fallthru
        _
      // Predicated region
      $region37: #{tpu_custom_call.1} parent=11 // pred_check
        %p312 = pneg %p190
      $region38: #{tpu_custom_call.1} parent=11 // pred_check_branch
        %314 = sbr.rel (%p312) target = $region40
      $region39: #{tpu_custom_call.1} parent=11 // pred_region
        _
      $region40: #{tpu_custom_call.1} parent=11 // pred_fallthru
        _
      // Predicated region
      $region41: #{tpu_custom_call.1} parent=11 // pred_check
        %p315 = pneg %p211
      $region42: #{tpu_custom_call.1} parent=11 // pred_check_branch
        %317 = sbr.rel (%p315) target = $region44
      $region43: #{tpu_custom_call.1} parent=11 // pred_region
        _
      $region44: #{tpu_custom_call.1} parent=11 // pred_fallthru
        _
      // Predicated region
      $region45: #{tpu_custom_call.1} parent=11 // pred_check
        %p318 = pneg %p232
      $region46: #{tpu_custom_call.1} parent=11 // pred_check_branch
        %320 = sbr.rel (%p318) target = $region48
      $region47: #{tpu_custom_call.1} parent=11 // pred_region
        _
      $region48: #{tpu_custom_call.1} parent=11 // pred_fallthru
        _
      // Predicated region
      $region49: #{tpu_custom_call.1} parent=11 // pred_check
        %p321 = pneg %p253
      $region50: #{tpu_custom_call.1} parent=11 // pred_check_branch
        %323 = sbr.rel (%p321) target = $region52
      $region51: #{tpu_custom_call.1} parent=11 // pred_region
        _
      $region52: #{tpu_custom_call.1} parent=11 // pred_fallthru
        _
    $region12: #{tpu_custom_call.1} parent=5 // pred_fallthru
      _
    %p324 = scmp.lt.s32.totalorder %s17, 2
    // Predicated region
    $region53: #{tpu_custom_call.1} parent=5 // pred_check
      %p325 = pneg %p324
    $region54: #{tpu_custom_call.1} parent=5 // pred_check_branch
      %327 = sbr.rel (%p325) target = $region56
    $region55: #{tpu_custom_call.1} parent=5 // pred_region
      // Predicated region
      $region57: #{tpu_custom_call.1} parent=55 // pred_check
        %p328 = pneg %p37
      $region58: #{tpu_custom_call.1} parent=55 // pred_check_branch
        %330 = sbr.rel (%p328) target = $region60
      $region59: #{tpu_custom_call.1} parent=55 // pred_region
        %s331 = smul.u32 2, %s17
        %p332 = scmp.lt.s32.totalorder %s331, 3
        %s333 = scalar_select %p332, %s331, 3
        %s334 = smul.addr %s333, 4
        %s335 = scalar_lea.vmem %s0, %s334
        %s336 = smul.u32 2, %s17
      $region60: #{tpu_custom_call.1} parent=55 // pred_fallthru
        _
    $region56: #{tpu_custom_call.1} parent=5 // pred_fallthru
      _
    %p337 = scmp.le.s32.totalorder 1, %s17
    %p338 = scmp.lt.s32.totalorder %s17, 3
    %p339 = pnand %p337, %p338
    %p340 = pneg %p339
    // Predicated region
    $region61: #{tpu_custom_call.1} parent=5 // pred_check
      _
    $region62: #{tpu_custom_call.1} parent=5 // pred_check_branch
      %342 = sbr.rel (%p339) target = $region64
    $region63: #{tpu_custom_call.1} parent=5 // pred_region
      %s343 = ssub.s32 %s17, 1
      %s344 = smul.u32 2, %s22
      %p345 = scmp.lt.s32.totalorder %s344, 3
      %s346 = scalar_select %p345, %s344, 3
      %s347 = smul.addr %s346, 4
      %s348 = scalar_lea.vmem %s0, %s347
      %p349 = pneg %p43
      %p350 = pneg %p40
      %p351 = pneg %p64
      %p352 = pneg %p61
      %p353 = pneg %p85
      %p354 = pneg %p82
      %p355 = pneg %p106
      %p356 = pneg %p103
      %p357 = pneg %p127
      %p358 = pneg %p124
      %p359 = pneg %p148
      %p360 = pneg %p145
      %p361 = pneg %p169
      %p362 = pneg %p166
      %p363 = pneg %p190
      %p364 = pneg %p187
      %p365 = pneg %p211
      %p366 = pneg %p208
      %p367 = pneg %p232
      %p368 = pneg %p229
      %p369 = pneg %p253
      %p370 = pneg %p250
      %p371 = pneg %p279
      %p372 = pneg %p276
      %s373 = smul.u32 2, %s22
      %p374 = scmp.lt.s32.totalorder %s373, 3
      %s375 = scalar_select %p374, %s373, 3
      %s376 = smul.addr %s375, 8
      %s377 = scalar_lea.vmem %s11, %s376
      %s378 = smul.u32 2, %s22
      %p379 = scmp.lt.s32.totalorder %s378, 3
      %s380 = scalar_select %p379, %s378, 3
      %s381 = smul.addr %s380, 4
      %s382 = scalar_lea.vmem %s0, %s381
      %s383 = smul.u32 2, %s22
      %s384 = smul.u32 2, %s22
      %p385 = scmp.lt.s32.totalorder %s384, 3
      %s386 = scalar_select %p385, %s384, 3
      %s387 = smul.addr %s386, 8
      %s388 = scalar_lea.vmem %s11, %s387
      %s389 = smul.u32 2, %s22
      %v391 = vld [vmem:[%s382] sm:$0xf]
      %v392 = vld [vmem:[%s382 + $0x4] sm:$0xf]
      %v393 = vld [vmem:[%s1] sm:$0xf]
      %v394 = vld [vmem:[%s2] sm:$0x3]
      %v396 = vlaneseq
      %v397 = vshrl.u32 %v396, 7
      %v398 = vsub.s32 0, %v397
      %v399 = vrot.slane %v394, %v398
      %v400 = vlaneseq
      %v401 = vshrl.u32 %v400, 7
      %v402 = vsub.s32 1, %v401
      %v403 = vrot.slane %v394, %v402
      %v408 = vunpack.c.l.b16 %v391
      %v409 = vunpack.c.l.b16 %v392
      %v410 = vpack.c.b16 %v409, %v408
      %v413 = vunpack.c.l.s4 1983009808
      %v414 = vunpack.c.0.s8 %v413
      %v415 = vlaneseq
      %v416 = vshrl.u32 %v415, 7
      %v417 = vsub.s32 %v414, %v416
      %v418 = vrot.slane %v393, %v417
      %v419 = vcombine.high %v418, %v418
      %vm420 = vcmask 31744
      %v422 = vsel %vm420, %v410, 0
      %vm424 = vcmask 1041408
      %v426 = vsel %vm424, %v418, 0
      %v429 = vsel %vm424, %v419, 0
      %431 = vmatprep.subr.bf16.mxu0 0
      %432 = vmatpush1.bf16.msra.mxu0 0
      %433 = vmatprep.subr.bf16.mxu0 0
      %434 = vmatpush1.bf16.msra.mxu0 0
      %435 = vmatprep.subr.bf16.mxu0 0
      %436 = vmatpush1.bf16.msra.mxu0 0
      %437 = vmatprep.subr.bf16.mxu0 0
      %438 = vmatpush1.bf16.msra.mxu0 0
      %439 = vmatprep.subr.bf16.mxu0 0
      %440 = vmatpush1.bf16.msra.mxu0 0
      %441 = vmatprep.subr.bf16.mxu0 0
      %442 = vmatpush1.bf16.msra.mxu0 0
      %443 = vmatprep.subr.bf16.mxu0 0
      %444 = vmatpush1.bf16.msra.mxu0 0
      %445 = vmatprep.subr.bf16.mxu0 %v429
      %446 = vmatpush1.bf16.msra.mxu0 %v426
      %447 = vmatprep.subr.bf16.mxu0 0
      %448 = vmatpush2.bf16.msra.mxu0 0
      %449 = vmatprep.subr.bf16.mxu0 0
      %450 = vmatpush2.bf16.msra.mxu0 0
      %451 = vmatprep.subr.bf16.mxu0 0
      %452 = vmatpush2.bf16.msra.mxu0 0
      %453 = vmatprep.subr.bf16.mxu0 0
      %454 = vmatpush2.bf16.msra.mxu0 0
      %455 = vmatprep.subr.bf16.mxu0 0
      %456 = vmatpush2.bf16.msra.mxu0 0
      %457 = vmatprep.subr.bf16.mxu0 0
      %458 = vmatpush2.bf16.msra.mxu0 0
      %459 = vmatprep.subr.bf16.mxu0 0
      %460 = vmatpush2.bf16.msra.mxu0 0
      %461 = vmatprep.subr.bf16.mxu0 0
      %462 = vmatpush2.bf16.msra.mxu0 0
      %463 = vmatprep.mubr.bf16.mxu0 0
      %464 = vmatmul.mubr.bf16.gmra.mxu0 %v422
      %v465 = vpop.f32.mrf.mxu0
      %v466 = vadd.f32 %v399, %v465
      %v467 = vpop.f32.mrf.mxu0
      %v468 = vadd.f32 %v403, %v467
      %v469 = vpop.f32.mrf.mxu0
      %v470 = vadd.f32 %v399, %v469
      %v471 = vpop.f32.mrf.mxu0
      %v472 = vadd.f32 %v403, %v471
      %473 = vdwg.mxu0
      %v474 = vmax.f32 %v466, 0.0
      %v475 = vmax.f32 %v468, 0.0
      %v476 = vmax.f32 %v470, 0.0
      %v477 = vmax.f32 %v472, 0.0
      %v478 = vpack.c.bf16 %v476, %v474
      %v479 = vpack.c.bf16 %v477, %v475
      %v480 = vlaneseq
      %v481 = vshrl.u32 %v480, 7
      %v482 = vadd.s32 %v481, 8
      %vm483 = vcmp.lt.s32.totalorder %v481, 0
      %v484 = vsub.s32 0, %v481
      %v485 = vsel %vm483, %v484, %v481
      %v486 = vshrl.u32 %v485, 4
      %v487 = vand.u32 %v485, 15
      %v488 = vsub.s32 0, %v487
      %v489 = vsel %vm483, %v488, %v487
      %vm490 = vcmp.lt.s32.totalorder %v482, 0
      %v491 = vsub.s32 0, %v482
      %v492 = vsel %vm490, %v491, %v482
      %v493 = vshrl.u32 %v492, 4
      %v494 = vand.u32 %v492, 15
      %v495 = vsub.s32 0, %v494
      %v496 = vsel %vm490, %v495, %v494
      %vm497 = vcmp.ne.s32.totalorder %v489, 0
      %vm498 = vcmp.ne.s32.totalorder %v496, 0
      %vm499 = vcmp.lt.s32.totalorder %v489, 0
      %vm500 = vcmp.lt.s32.totalorder %v496, 0
      %vm501 = vmand %vm499, %vm497
      %vm502 = vmand %vm500, %vm498
      %v503 = vadd.s32 %v489, 16
      %v504 = vadd.s32 %v496, 16
      %v505 = vsel %vm501, %v503, %v489
      %v506 = vsel %vm502, %v504, %v496
      %v507 = vld [vmem:[%s3] sm:$0xff]
      %v508 = vld [vmem:[%s3 + $0x8] sm:$0xff]
      %v509 = vld [vmem:[%s3 + $0x10] sm:$0xff]
      %v510 = vld [vmem:[%s3 + $0x18] sm:$0xff]
      %v511 = vld [vmem:[%s3 + $0x20] sm:$0xff]
      %v512 = vld [vmem:[%s3 + $0x28] sm:$0xff]
      %v513 = vld [vmem:[%s3 + $0x30] sm:$0xff]
      %v514 = vld [vmem:[%s3 + $0x38] sm:$0xff]
      %v515 = vld [vmem:[%s3 + $0x40] sm:$0xff]
      %v516 = vld [vmem:[%s3 + $0x48] sm:$0xff]
      %v517 = vld [vmem:[%s3 + $0x50] sm:$0xff]
      %v518 = vld [vmem:[%s3 + $0x58] sm:$0xff]
      %v519 = vld [vmem:[%s3 + $0x60] sm:$0xff]
      %v520 = vld [vmem:[%s3 + $0x68] sm:$0xff]
      %v521 = vld [vmem:[%s3 + $0x70] sm:$0xff]
      %v522 = vld [vmem:[%s3 + $0x78] sm:$0xff]
      %v523 = vld [vmem:[%s7] sm:$0x3]
      %v525 = vlaneseq
      %v526 = vshrl.u32 %v525, 7
      %v527 = vsub.s32 0, %v526
      %v528 = vrot.slane %v523, %v527
      %v529 = vlaneseq
      %v530 = vshrl.u32 %v529, 7
      %v531 = vsub.s32 1, %v530
      %v532 = vrot.slane %v523, %v531
      %v551 = vunpack.c.l.b16 %v507
      %v552 = vunpack.c.h.b16 %v507
      %v553 = vunpack.c.l.b16 %v508
      %v554 = vunpack.c.h.b16 %v508
      %v555 = vunpack.c.l.b16 %v509
      %v556 = vunpack.c.h.b16 %v509
      %v557 = vunpack.c.l.b16 %v510
      %v558 = vunpack.c.h.b16 %v510
      %v559 = vunpack.c.l.b16 %v511
      %v560 = vunpack.c.h.b16 %v511
      %v561 = vunpack.c.l.b16 %v512
      %v562 = vunpack.c.h.b16 %v512
      %v563 = vunpack.c.l.b16 %v513
      %v564 = vunpack.c.h.b16 %v513
      %v565 = vunpack.c.l.b16 %v514
      %v566 = vunpack.c.h.b16 %v514
      %v567 = vunpack.c.l.b16 %v515
      %v568 = vunpack.c.h.b16 %v515
      %v569 = vunpack.c.l.b16 %v516
      %v570 = vunpack.c.h.b16 %v516
      %v571 = vunpack.c.l.b16 %v517
      %v572 = vunpack.c.h.b16 %v517
      %v573 = vunpack.c.l.b16 %v518
      %v574 = vunpack.c.h.b16 %v518
      %v575 = vunpack.c.l.b16 %v519
      %v576 = vunpack.c.h.b16 %v519
      %v577 = vunpack.c.l.b16 %v520
      %v578 = vunpack.c.h.b16 %v520
      %v579 = vunpack.c.l.b16 %v521
      %v580 = vunpack.c.h.b16 %v521
      %v581 = vunpack.c.l.b16 %v522
      %v582 = vunpack.c.h.b16 %v522
      %v583 = vpack.c.b16 %v553, %v551
      %v584 = vpack.c.b16 %v554, %v552
      %v585 = vpack.c.b16 %v557, %v555
      %v586 = vpack.c.b16 %v558, %v556
      %v587 = vpack.c.b16 %v561, %v559
      %v588 = vpack.c.b16 %v562, %v560
      %v589 = vpack.c.b16 %v565, %v563
      %v590 = vpack.c.b16 %v566, %v564
      %v591 = vpack.c.b16 %v569, %v567
      %v592 = vpack.c.b16 %v570, %v568
      %v593 = vpack.c.b16 %v573, %v571
      %v594 = vpack.c.b16 %v574, %v572
      %v595 = vpack.c.b16 %v577, %v575
      %v596 = vpack.c.b16 %v578, %v576
      %v597 = vpack.c.b16 %v581, %v579
      %v598 = vpack.c.b16 %v582, %v580
      %615 = vmatprep.subr.bf16.mxu0 %v598
      %616 = vmatpush1.bf16.msra.mxu0 %v597
      %617 = vmatprep.subr.bf16.mxu0 %v596
      %618 = vmatpush1.bf16.msra.mxu0 %v595
      %619 = vmatprep.subr.bf16.mxu0 %v594
      %620 = vmatpush1.bf16.msra.mxu0 %v593
      %621 = vmatprep.subr.bf16.mxu0 %v592
      %622 = vmatpush1.bf16.msra.mxu0 %v591
      %623 = vmatprep.subr.bf16.mxu0 %v590
      %624 = vmatpush1.bf16.msra.mxu0 %v589
      %625 = vmatprep.subr.bf16.mxu0 %v588
      %626 = vmatpush1.bf16.msra.mxu0 %v587
      %627 = vmatprep.subr.bf16.mxu0 %v586
      %628 = vmatpush1.bf16.msra.mxu0 %v585
      %629 = vmatprep.subr.bf16.mxu0 %v584
      %630 = vmatpush1.bf16.msra.mxu0 %v583
      %631 = vmatprep.subr.bf16.mxu0 0
      %632 = vmatpush2.bf16.msra.mxu0 0
      %633 = vmatprep.subr.bf16.mxu0 0
      %634 = vmatpush2.bf16.msra.mxu0 0
      %635 = vmatprep.subr.bf16.mxu0 0
      %636 = vmatpush2.bf16.msra.mxu0 0
      %637 = vmatprep.subr.bf16.mxu0 0
      %638 = vmatpush2.bf16.msra.mxu0 0
      %639 = vmatprep.subr.bf16.mxu0 0
      %640 = vmatpush2.bf16.msra.mxu0 0
      %641 = vmatprep.subr.bf16.mxu0 0
      %642 = vmatpush2.bf16.msra.mxu0 0
      %643 = vmatprep.subr.bf16.mxu0 0
      %644 = vmatpush2.bf16.msra.mxu0 0
      %645 = vmatprep.subr.bf16.mxu0 0
      %646 = vmatpush2.bf16.msra.mxu0 0
      %647 = vmatprep.mubr.bf16.mxu0 0
      %648 = vmatmul.mubr.bf16.gmra.mxu0 %v478
      %v649 = vpop.f32.mrf.mxu0
      %v650 = vadd.f32 %v528, %v649
      %v651 = vpop.f32.mrf.mxu0
      %v652 = vadd.f32 %v532, %v651
      %v653 = vpop.f32.mrf.mxu0
      %v654 = vadd.f32 %v528, %v653
      %v655 = vpop.f32.mrf.mxu0
      %v656 = vadd.f32 %v532, %v655
      %657 = vdwg.mxu0
      %v658 = vrot.slane %v474, 7
      %v659 = vrot.slane %v476, 7
      %vm660 = vcmp.lt.s32.totalorder %v481, 1
      %v661 = vsel %vm660, %v658, %v659
      %v662 = vsel %vm660, %v659, %v658
      %v663 = vadd.s32 %v505, 4294967295
      %v664 = vadd.s32 %v506, 4294967295
      %vm665 = vcmp.ge.s32.totalorder %v663, 0
      %vm666 = vcmp.ge.s32.totalorder %v664, 0
      %vm667 = vcmp.lt.s32.totalorder %v663, 16
      %vm668 = vcmp.lt.s32.totalorder %v664, 16
      %vm669 = vmand %vm665, %vm667
      %vm670 = vmand %vm666, %vm668
      %v671 = vsel %vm669, 1, 0
      %v672 = vsel %vm670, 1, 0
      %vm673 = vcmp.eq.s32.totalorder %v671, 1
      %vm674 = vcmp.eq.s32.totalorder %v672, 1
      %v675 = vsel %vm673, %v662, 0.0
      %v676 = vsel %vm674, %v661, 0.0
      %v677 = vpack.c.bf16 %v676, %v675
      %v678 = vld [vmem:[%s4] sm:$0xff]
      %v679 = vld [vmem:[%s4 + $0x8] sm:$0xff]
      %v680 = vld [vmem:[%s4 + $0x10] sm:$0xff]
      %v681 = vld [vmem:[%s4 + $0x18] sm:$0xff]
      %v682 = vld [vmem:[%s4 + $0x20] sm:$0xff]
      %v683 = vld [vmem:[%s4 + $0x28] sm:$0xff]
      %v684 = vld [vmem:[%s4 + $0x30] sm:$0xff]
      %v685 = vld [vmem:[%s4 + $0x38] sm:$0xff]
      %v686 = vld [vmem:[%s4 + $0x40] sm:$0xff]
      %v687 = vld [vmem:[%s4 + $0x48] sm:$0xff]
      %v688 = vld [vmem:[%s4 + $0x50] sm:$0xff]
      %v689 = vld [vmem:[%s4 + $0x58] sm:$0xff]
      %v690 = vld [vmem:[%s4 + $0x60] sm:$0xff]
      %v691 = vld [vmem:[%s4 + $0x68] sm:$0xff]
      %v692 = vld [vmem:[%s4 + $0x70] sm:$0xff]
      %v693 = vld [vmem:[%s4 + $0x78] sm:$0xff]
      %v710 = vunpack.c.l.b16 %v678
      %v711 = vunpack.c.h.b16 %v678
      %v712 = vunpack.c.l.b16 %v679
      %v713 = vunpack.c.h.b16 %v679
      %v714 = vunpack.c.l.b16 %v680
      %v715 = vunpack.c.h.b16 %v680
      %v716 = vunpack.c.l.b16 %v681
      %v717 = vunpack.c.h.b16 %v681
      %v718 = vunpack.c.l.b16 %v682
      %v719 = vunpack.c.h.b16 %v682
      %v720 = vunpack.c.l.b16 %v683
      %v721 = vunpack.c.h.b16 %v683
      %v722 = vunpack.c.l.b16 %v684
      %v723 = vunpack.c.h.b16 %v684
      %v724 = vunpack.c.l.b16 %v685
      %v725 = vunpack.c.h.b16 %v685
      %v726 = vunpack.c.l.b16 %v686
      %v727 = vunpack.c.h.b16 %v686
      %v728 = vunpack.c.l.b16 %v687
      %v729 = vunpack.c.h.b16 %v687
      %v730 = vunpack.c.l.b16 %v688
      %v731 = vunpack.c.h.b16 %v688
      %v732 = vunpack.c.l.b16 %v689
      %v733 = vunpack.c.h.b16 %v689
      %v734 = vunpack.c.l.b16 %v690
      %v735 = vunpack.c.h.b16 %v690
      %v736 = vunpack.c.l.b16 %v691
      %v737 = vunpack.c.h.b16 %v691
      %v738 = vunpack.c.l.b16 %v692
      %v739 = vunpack.c.h.b16 %v692
      %v740 = vunpack.c.l.b16 %v693
      %v741 = vunpack.c.h.b16 %v693
      %v742 = vpack.c.b16 %v712, %v710
      %v743 = vpack.c.b16 %v713, %v711
      %v744 = vpack.c.b16 %v716, %v714
      %v745 = vpack.c.b16 %v717, %v715
      %v746 = vpack.c.b16 %v720, %v718
      %v747 = vpack.c.b16 %v721, %v719
      %v748 = vpack.c.b16 %v724, %v722
      %v749 = vpack.c.b16 %v725, %v723
      %v750 = vpack.c.b16 %v728, %v726
      %v751 = vpack.c.b16 %v729, %v727
      %v752 = vpack.c.b16 %v732, %v730
      %v753 = vpack.c.b16 %v733, %v731
      %v754 = vpack.c.b16 %v736, %v734
      %v755 = vpack.c.b16 %v737, %v735
      %v756 = vpack.c.b16 %v740, %v738
      %v757 = vpack.c.b16 %v741, %v739
      %774 = vmatprep.subr.bf16.mxu0 %v757
      %775 = vmatpush1.bf16.msra.mxu0 %v756
      %776 = vmatprep.subr.bf16.mxu0 %v755
      %777 = vmatpush1.bf16.msra.mxu0 %v754
      %778 = vmatprep.subr.bf16.mxu0 %v753
      %779 = vmatpush1.bf16.msra.mxu0 %v752
      %780 = vmatprep.subr.bf16.mxu0 %v751
      %781 = vmatpush1.bf16.msra.mxu0 %v750
      %782 = vmatprep.subr.bf16.mxu0 %v749
      %783 = vmatpush1.bf16.msra.mxu0 %v748
      %784 = vmatprep.subr.bf16.mxu0 %v747
      %785 = vmatpush1.bf16.msra.mxu0 %v746
      %786 = vmatprep.subr.bf16.mxu0 %v745
      %787 = vmatpush1.bf16.msra.mxu0 %v744
      %788 = vmatprep.subr.bf16.mxu0 %v743
      %789 = vmatpush1.bf16.msra.mxu0 %v742
      %790 = vmatprep.subr.bf16.mxu0 0
      %791 = vmatpush2.bf16.msra.mxu0 0
      %792 = vmatprep.subr.bf16.mxu0 0
      %793 = vmatpush2.bf16.msra.mxu0 0
      %794 = vmatprep.subr.bf16.mxu0 0
      %795 = vmatpush2.bf16.msra.mxu0 0
      %796 = vmatprep.subr.bf16.mxu0 0
      %797 = vmatpush2.bf16.msra.mxu0 0
      %798 = vmatprep.subr.bf16.mxu0 0
      %799 = vmatpush2.bf16.msra.mxu0 0
      %800 = vmatprep.subr.bf16.mxu0 0
      %801 = vmatpush2.bf16.msra.mxu0 0
      %802 = vmatprep.subr.bf16.mxu0 0
      %803 = vmatpush2.bf16.msra.mxu0 0
      %804 = vmatprep.subr.bf16.mxu0 0
      %805 = vmatpush2.bf16.msra.mxu0 0
      %806 = vmatprep.mubr.bf16.mxu0 0
      %807 = vmatmul.mubr.bf16.gmra.mxu0 %v677
      %v808 = vpop.f32.mrf.mxu0
      %v809 = vadd.f32 0.0, %v808
      %v810 = vpop.f32.mrf.mxu0
      %v811 = vadd.f32 0.0, %v810
      %v812 = vpop.f32.mrf.mxu0
      %v813 = vadd.f32 0.0, %v812
      %v814 = vpop.f32.mrf.mxu0
      %v815 = vadd.f32 0.0, %v814
      %816 = vdwg.mxu0
      %v817 = vadd.f32 %v650, %v809
      %v818 = vadd.f32 %v652, %v811
      %v819 = vadd.f32 %v654, %v813
      %v820 = vadd.f32 %v656, %v815
      %v821 = vrot.slane %v474, 1
      %v822 = vrot.slane %v476, 1
      %vm823 = vcmp.lt.s32.totalorder %v481, 7
      %v824 = vsel %vm823, %v821, %v822
      %v825 = vsel %vm823, %v822, %v821
      %v826 = vadd.s32 %v505, 1
      %v827 = vadd.s32 %v506, 1
      %vm828 = vcmp.ge.s32.totalorder %v826, 0
      %vm829 = vcmp.ge.s32.totalorder %v827, 0
      %vm830 = vcmp.lt.s32.totalorder %v826, 16
      %vm831 = vcmp.lt.s32.totalorder %v827, 16
      %vm832 = vmand %vm828, %vm830
      %vm833 = vmand %vm829, %vm831
      %v834 = vsel %vm832, 1, 0
      %v835 = vsel %vm833, 1, 0
      %vm836 = vcmp.eq.s32.totalorder %v834, 1
      %vm837 = vcmp.eq.s32.totalorder %v835, 1
      %v838 = vsel %vm836, %v824, 0.0
      %v839 = vsel %vm837, %v825, 0.0
      %v840 = vpack.c.bf16 %v839, %v838
      %v841 = vld [vmem:[%s5] sm:$0xff]
      %v842 = vld [vmem:[%s5 + $0x8] sm:$0xff]
      %v843 = vld [vmem:[%s5 + $0x10] sm:$0xff]
      %v844 = vld [vmem:[%s5 + $0x18] sm:$0xff]
      %v845 = vld [vmem:[%s5 + $0x20] sm:$0xff]
      %v846 = vld [vmem:[%s5 + $0x28] sm:$0xff]
      %v847 = vld [vmem:[%s5 + $0x30] sm:$0xff]
      %v848 = vld [vmem:[%s5 + $0x38] sm:$0xff]
      %v849 = vld [vmem:[%s5 + $0x40] sm:$0xff]
      %v850 = vld [vmem:[%s5 + $0x48] sm:$0xff]
      %v851 = vld [vmem:[%s5 + $0x50] sm:$0xff]
      %v852 = vld [vmem:[%s5 + $0x58] sm:$0xff]
      %v853 = vld [vmem:[%s5 + $0x60] sm:$0xff]
      %v854 = vld [vmem:[%s5 + $0x68] sm:$0xff]
      %v855 = vld [vmem:[%s5 + $0x70] sm:$0xff]
      %v856 = vld [vmem:[%s5 + $0x78] sm:$0xff]
      %v873 = vunpack.c.l.b16 %v841
      %v874 = vunpack.c.h.b16 %v841
      %v875 = vunpack.c.l.b16 %v842
      %v876 = vunpack.c.h.b16 %v842
      %v877 = vunpack.c.l.b16 %v843
      %v878 = vunpack.c.h.b16 %v843
      %v879 = vunpack.c.l.b16 %v844
      %v880 = vunpack.c.h.b16 %v844
      %v881 = vunpack.c.l.b16 %v845
      %v882 = vunpack.c.h.b16 %v845
      %v883 = vunpack.c.l.b16 %v846
      %v884 = vunpack.c.h.b16 %v846
      %v885 = vunpack.c.l.b16 %v847
      %v886 = vunpack.c.h.b16 %v847
      %v887 = vunpack.c.l.b16 %v848
      %v888 = vunpack.c.h.b16 %v848
      %v889 = vunpack.c.l.b16 %v849
      %v890 = vunpack.c.h.b16 %v849
      %v891 = vunpack.c.l.b16 %v850
      %v892 = vunpack.c.h.b16 %v850
      %v893 = vunpack.c.l.b16 %v851
      %v894 = vunpack.c.h.b16 %v851
      %v895 = vunpack.c.l.b16 %v852
      %v896 = vunpack.c.h.b16 %v852
      %v897 = vunpack.c.l.b16 %v853
      %v898 = vunpack.c.h.b16 %v853
      %v899 = vunpack.c.l.b16 %v854
      %v900 = vunpack.c.h.b16 %v854
      %v901 = vunpack.c.l.b16 %v855
      %v902 = vunpack.c.h.b16 %v855
      %v903 = vunpack.c.l.b16 %v856
      %v904 = vunpack.c.h.b16 %v856
      %v905 = vpack.c.b16 %v875, %v873
      %v906 = vpack.c.b16 %v876, %v874
      %v907 = vpack.c.b16 %v879, %v877
      %v908 = vpack.c.b16 %v880, %v878
      %v909 = vpack.c.b16 %v883, %v881
      %v910 = vpack.c.b16 %v884, %v882
      %v911 = vpack.c.b16 %v887, %v885
      %v912 = vpack.c.b16 %v888, %v886
      %v913 = vpack.c.b16 %v891, %v889
      %v914 = vpack.c.b16 %v892, %v890
      %v915 = vpack.c.b16 %v895, %v893
      %v916 = vpack.c.b16 %v896, %v894
      %v917 = vpack.c.b16 %v899, %v897
      %v918 = vpack.c.b16 %v900, %v898
      %v919 = vpack.c.b16 %v903, %v901
      %v920 = vpack.c.b16 %v904, %v902
      %937 = vmatprep.subr.bf16.mxu0 %v920
      %938 = vmatpush1.bf16.msra.mxu0 %v919
      %939 = vmatprep.subr.bf16.mxu0 %v918
      %940 = vmatpush1.bf16.msra.mxu0 %v917
      %941 = vmatprep.subr.bf16.mxu0 %v916
      %942 = vmatpush1.bf16.msra.mxu0 %v915
      %943 = vmatprep.subr.bf16.mxu0 %v914
      %944 = vmatpush1.bf16.msra.mxu0 %v913
      %945 = vmatprep.subr.bf16.mxu0 %v912
      %946 = vmatpush1.bf16.msra.mxu0 %v911
      %947 = vmatprep.subr.bf16.mxu0 %v910
      %948 = vmatpush1.bf16.msra.mxu0 %v909
      %949 = vmatprep.subr.bf16.mxu0 %v908
      %950 = vmatpush1.bf16.msra.mxu0 %v907
      %951 = vmatprep.subr.bf16.mxu0 %v906
      %952 = vmatpush1.bf16.msra.mxu0 %v905
      %953 = vmatprep.subr.bf16.mxu0 0
      %954 = vmatpush2.bf16.msra.mxu0 0
      %955 = vmatprep.subr.bf16.mxu0 0
      %956 = vmatpush2.bf16.msra.mxu0 0
      %957 = vmatprep.subr.bf16.mxu0 0
      %958 = vmatpush2.bf16.msra.mxu0 0
      %959 = vmatprep.subr.bf16.mxu0 0
      %960 = vmatpush2.bf16.msra.mxu0 0
      %961 = vmatprep.subr.bf16.mxu0 0
      %962 = vmatpush2.bf16.msra.mxu0 0
      %963 = vmatprep.subr.bf16.mxu0 0
      %964 = vmatpush2.bf16.msra.mxu0 0
      %965 = vmatprep.subr.bf16.mxu0 0
      %966 = vmatpush2.bf16.msra.mxu0 0
      %967 = vmatprep.subr.bf16.mxu0 0
      %968 = vmatpush2.bf16.msra.mxu0 0
      %969 = vmatprep.mubr.bf16.mxu0 0
      %970 = vmatmul.mubr.bf16.gmra.mxu0 %v840
      %v971 = vpop.f32.mrf.mxu0
      %v972 = vadd.f32 0.0, %v971
      %v973 = vpop.f32.mrf.mxu0
      %v974 = vadd.f32 0.0, %v973
      %v975 = vpop.f32.mrf.mxu0
      %v976 = vadd.f32 0.0, %v975
      %v977 = vpop.f32.mrf.mxu0
      %v978 = vadd.f32 0.0, %v977
      %979 = vdwg.mxu0
      %v980 = vadd.f32 %v817, %v972
      %v981 = vadd.f32 %v818, %v974
      %v982 = vadd.f32 %v819, %v976
      %v983 = vadd.f32 %v820, %v978
      %986 = vrot.lane.b32.xlu0 %v474, 64
      %v987 = vpop.permute.xlu0 %986
      %988 = vrot.lane.b32.xlu0 %v476, 64
      %v989 = vpop.permute.xlu0 %988
      %v992 = vrot.slane %v987, 2
      %v993 = vrot.slane %v989, 2
      %vm994 = vcmp.lt.s32.totalorder %v481, 6
      %v995 = vsel %vm994, %v992, %v993
      %v996 = vsel %vm994, %v993, %v992
      %v997 = vadd.s32 %v505, 2
      %v998 = vadd.s32 %v506, 2
      %vm999 = vcmp.ge.s32.totalorder %v997, 0
      %vm1000 = vcmp.ge.s32.totalorder %v998, 0
      %vm1001 = vcmp.lt.s32.totalorder %v997, 16
      %vm1002 = vcmp.lt.s32.totalorder %v998, 16
      %vm1003 = vmand %vm999, %vm1001
      %vm1004 = vmand %vm1000, %vm1002
      %v1005 = vsel %vm1003, 1, 0
      %v1006 = vsel %vm1004, 1, 0
      %vm1007 = vcmp.eq.s32.totalorder %v1005, 1
      %vm1008 = vcmp.eq.s32.totalorder %v1006, 1
      %v1009 = vsel %vm1007, %v995, 0.0
      %v1010 = vsel %vm1008, %v996, 0.0
      %v1011 = vpack.c.bf16 %v1010, %v1009
      %v1012 = vrot.slane %v987, 6
      %v1013 = vrot.slane %v989, 6
      %vm1014 = vcmp.lt.s32.totalorder %v481, 2
      %v1015 = vsel %vm1014, %v1012, %v1013
      %v1016 = vsel %vm1014, %v1013, %v1012
      %v1017 = vadd.s32 %v505, 4294967294
      %v1018 = vadd.s32 %v506, 4294967294
      %vm1019 = vcmp.ge.s32.totalorder %v1017, 0
      %vm1020 = vcmp.ge.s32.totalorder %v1018, 0
      %vm1021 = vcmp.lt.s32.totalorder %v1017, 16
      %vm1022 = vcmp.lt.s32.totalorder %v1018, 16
      %vm1023 = vmand %vm1019, %vm1021
      %vm1024 = vmand %vm1020, %vm1022
      %v1025 = vsel %vm1023, 1, 0
      %v1026 = vsel %vm1024, 1, 0
      %vm1027 = vcmp.eq.s32.totalorder %v1025, 1
      %vm1028 = vcmp.eq.s32.totalorder %v1026, 1
      %v1029 = vsel %vm1027, %v1016, 0.0
      %v1030 = vsel %vm1028, %v1015, 0.0
      %v1031 = vpack.c.bf16 %v1030, %v1029
      %1033 = vrot.lane.b32.xlu0 %v1031, 64
      %v1034 = vpop.permute.xlu0 %1033
      %vm1035 = vcmask 523264
      %v1038 = vsel %vm1035, %v1011, %v1034
      %v1040 = vld [vmem:[%s6] sm:$0xff]
      %v1041 = vld [vmem:[%s6 + $0x8] sm:$0xff]
      %v1042 = vld [vmem:[%s6 + $0x10] sm:$0xff]
      %v1043 = vld [vmem:[%s6 + $0x18] sm:$0xff]
      %v1044 = vld [vmem:[%s6 + $0x20] sm:$0xff]
      %v1045 = vld [vmem:[%s6 + $0x28] sm:$0xff]
      %v1046 = vld [vmem:[%s6 + $0x30] sm:$0xff]
      %v1047 = vld [vmem:[%s6 + $0x38] sm:$0xff]
      %v1048 = vld [vmem:[%s6 + $0x40] sm:$0xff]
      %v1049 = vld [vmem:[%s6 + $0x48] sm:$0xff]
      %v1050 = vld [vmem:[%s6 + $0x50] sm:$0xff]
      %v1051 = vld [vmem:[%s6 + $0x58] sm:$0xff]
      %v1052 = vld [vmem:[%s6 + $0x60] sm:$0xff]
      %v1053 = vld [vmem:[%s6 + $0x68] sm:$0xff]
      %v1054 = vld [vmem:[%s6 + $0x70] sm:$0xff]
      %v1055 = vld [vmem:[%s6 + $0x78] sm:$0xff]
      %v1072 = vunpack.c.l.b16 %v1040
      %v1073 = vunpack.c.h.b16 %v1040
      %v1074 = vunpack.c.l.b16 %v1041
      %v1075 = vunpack.c.h.b16 %v1041
      %v1076 = vunpack.c.l.b16 %v1042
      %v1077 = vunpack.c.h.b16 %v1042
      %v1078 = vunpack.c.l.b16 %v1043
      %v1079 = vunpack.c.h.b16 %v1043
      %v1080 = vunpack.c.l.b16 %v1044
      %v1081 = vunpack.c.h.b16 %v1044
      %v1082 = vunpack.c.l.b16 %v1045
      %v1083 = vunpack.c.h.b16 %v1045
      %v1084 = vunpack.c.l.b16 %v1046
      %v1085 = vunpack.c.h.b16 %v1046
      %v1086 = vunpack.c.l.b16 %v1047
      %v1087 = vunpack.c.h.b16 %v1047
      %v1088 = vunpack.c.l.b16 %v1048
      %v1089 = vunpack.c.h.b16 %v1048
      %v1090 = vunpack.c.l.b16 %v1049
      %v1091 = vunpack.c.h.b16 %v1049
      %v1092 = vunpack.c.l.b16 %v1050
      %v1093 = vunpack.c.h.b16 %v1050
      %v1094 = vunpack.c.l.b16 %v1051
      %v1095 = vunpack.c.h.b16 %v1051
      %v1096 = vunpack.c.l.b16 %v1052
      %v1097 = vunpack.c.h.b16 %v1052
      %v1098 = vunpack.c.l.b16 %v1053
      %v1099 = vunpack.c.h.b16 %v1053
      %v1100 = vunpack.c.l.b16 %v1054
      %v1101 = vunpack.c.h.b16 %v1054
      %v1102 = vunpack.c.l.b16 %v1055
      %v1103 = vunpack.c.h.b16 %v1055
      %v1104 = vpack.c.b16 %v1074, %v1072
      %v1105 = vpack.c.b16 %v1075, %v1073
      %v1106 = vpack.c.b16 %v1078, %v1076
      %v1107 = vpack.c.b16 %v1079, %v1077
      %v1108 = vpack.c.b16 %v1082, %v1080
      %v1109 = vpack.c.b16 %v1083, %v1081
      %v1110 = vpack.c.b16 %v1086, %v1084
      %v1111 = vpack.c.b16 %v1087, %v1085
      %v1112 = vpack.c.b16 %v1090, %v1088
      %v1113 = vpack.c.b16 %v1091, %v1089
      %v1114 = vpack.c.b16 %v1094, %v1092
      %v1115 = vpack.c.b16 %v1095, %v1093
      %v1116 = vpack.c.b16 %v1098, %v1096
      %v1117 = vpack.c.b16 %v1099, %v1097
      %v1118 = vpack.c.b16 %v1102, %v1100
      %v1119 = vpack.c.b16 %v1103, %v1101
      %1136 = vmatprep.subr.bf16.mxu0 %v1119
      %1137 = vmatpush1.bf16.msra.mxu0 %v1118
      %1138 = vmatprep.subr.bf16.mxu0 %v1117
      %1139 = vmatpush1.bf16.msra.mxu0 %v1116
      %1140 = vmatprep.subr.bf16.mxu0 %v1115
      %1141 = vmatpush1.bf16.msra.mxu0 %v1114
      %1142 = vmatprep.subr.bf16.mxu0 %v1113
      %1143 = vmatpush1.bf16.msra.mxu0 %v1112
      %1144 = vmatprep.subr.bf16.mxu0 %v1111
      %1145 = vmatpush1.bf16.msra.mxu0 %v1110
      %1146 = vmatprep.subr.bf16.mxu0 %v1109
      %1147 = vmatpush1.bf16.msra.mxu0 %v1108
      %1148 = vmatprep.subr.bf16.mxu0 %v1107
      %1149 = vmatpush1.bf16.msra.mxu0 %v1106
      %1150 = vmatprep.subr.bf16.mxu0 %v1105
      %1151 = vmatpush1.bf16.msra.mxu0 %v1104
      %1152 = vmatprep.subr.bf16.mxu0 0
      %1153 = vmatpush2.bf16.msra.mxu0 0
      %1154 = vmatprep.subr.bf16.mxu0 0
      %1155 = vmatpush2.bf16.msra.mxu0 0
      %1156 = vmatprep.subr.bf16.mxu0 0
      %1157 = vmatpush2.bf16.msra.mxu0 0
      %1158 = vmatprep.subr.bf16.mxu0 0
      %1159 = vmatpush2.bf16.msra.mxu0 0
      %1160 = vmatprep.subr.bf16.mxu0 0
      %1161 = vmatpush2.bf16.msra.mxu0 0
      %1162 = vmatprep.subr.bf16.mxu0 0
      %1163 = vmatpush2.bf16.msra.mxu0 0
      %1164 = vmatprep.subr.bf16.mxu0 0
      %1165 = vmatpush2.bf16.msra.mxu0 0
      %1166 = vmatprep.subr.bf16.mxu0 0
      %1167 = vmatpush2.bf16.msra.mxu0 0
      %1168 = vmatprep.mubr.bf16.mxu0 0
      %1169 = vmatmul.mubr.bf16.gmra.mxu0 %v1038
      %v1170 = vpop.f32.mrf.mxu0
      %v1171 = vadd.f32 0.0, %v1170
      %v1172 = vpop.f32.mrf.mxu0
      %v1173 = vadd.f32 0.0, %v1172
      %v1174 = vpop.f32.mrf.mxu0
      %v1175 = vadd.f32 0.0, %v1174
      %v1176 = vpop.f32.mrf.mxu0
      %v1177 = vadd.f32 0.0, %v1176
      %1178 = vdwg.mxu0
      %v1179 = vadd.f32 %v980, %v1171
      %v1180 = vadd.f32 %v981, %v1173
      %v1181 = vadd.f32 %v982, %v1175
      %v1182 = vadd.f32 %v983, %v1177
      %v1183 = vmax.f32 %v1179, 0.0
      %v1184 = vmax.f32 %v1180, 0.0
      %v1185 = vmax.f32 %v1181, 0.0
      %v1186 = vmax.f32 %v1182, 0.0
      %v1187 = vpack.c.bf16 %v1185, %v1183
      %v1188 = vpack.c.bf16 %v1186, %v1184
      %v1189 = vld [vmem:[%s8] sm:$0xf]
      %v1190 = vld [vmem:[%s8 + $0x4] sm:$0xf]
      %v1191 = vld [vmem:[%s8 + $0x8] sm:$0xf]
      %v1192 = vld [vmem:[%s8 + $0xc] sm:$0xf]
      %v1193 = vld [vmem:[%s8 + $0x10] sm:$0xf]
      %v1194 = vld [vmem:[%s8 + $0x14] sm:$0xf]
      %v1195 = vld [vmem:[%s8 + $0x18] sm:$0xf]
      %v1196 = vld [vmem:[%s8 + $0x1c] sm:$0xf]
      %v1197 = vld [vmem:[%s8 + $0x20] sm:$0xf]
      %v1198 = vld [vmem:[%s8 + $0x24] sm:$0xf]
      %v1199 = vld [vmem:[%s8 + $0x28] sm:$0xf]
      %v1200 = vld [vmem:[%s8 + $0x2c] sm:$0xf]
      %v1201 = vld [vmem:[%s8 + $0x30] sm:$0xf]
      %v1202 = vld [vmem:[%s8 + $0x34] sm:$0xf]
      %v1203 = vld [vmem:[%s8 + $0x38] sm:$0xf]
      %v1204 = vld [vmem:[%s8 + $0x3c] sm:$0xf]
      %v1205 = vld [vmem:[%s8 + $0x40] sm:$0xf]
      %v1206 = vld [vmem:[%s8 + $0x44] sm:$0xf]
      %v1207 = vld [vmem:[%s8 + $0x48] sm:$0xf]
      %v1208 = vld [vmem:[%s8 + $0x4c] sm:$0xf]
      %v1209 = vld [vmem:[%s9] sm:$0xf]
      %v1210 = vld [vmem:[%s9 + $0x4] sm:$0xf]
      %v1211 = vld [vmem:[%s9 + $0x8] sm:$0xf]
      %v1212 = vld [vmem:[%s9 + $0xc] sm:$0xf]
      %v1213 = vld [vmem:[%s9 + $0x10] sm:$0xf]
      %v1214 = vld [vmem:[%s9 + $0x14] sm:$0xf]
      %v1215 = vld [vmem:[%s9 + $0x18] sm:$0xf]
      %v1216 = vld [vmem:[%s9 + $0x1c] sm:$0xf]
      %v1217 = vld [vmem:[%s9 + $0x20] sm:$0xf]
      %v1218 = vld [vmem:[%s9 + $0x24] sm:$0xf]
      %v1219 = vld [vmem:[%s9 + $0x28] sm:$0xf]
      %v1220 = vld [vmem:[%s9 + $0x2c] sm:$0xf]
      %v1221 = vld [vmem:[%s9 + $0x30] sm:$0xf]
      %v1222 = vld [vmem:[%s9 + $0x34] sm:$0xf]
      %v1223 = vld [vmem:[%s9 + $0x38] sm:$0xf]
      %v1224 = vld [vmem:[%s9 + $0x3c] sm:$0xf]
      %v1225 = vld [vmem:[%s9 + $0x40] sm:$0xf]
      %v1226 = vld [vmem:[%s9 + $0x44] sm:$0xf]
      %v1227 = vld [vmem:[%s9 + $0x48] sm:$0xf]
      %v1228 = vld [vmem:[%s9 + $0x4c] sm:$0xf]
      %v1229 = vld [vmem:[%s9 + $0x50] sm:$0xf]
      %v1230 = vld [vmem:[%s9 + $0x54] sm:$0xf]
      %v1231 = vld [vmem:[%s9 + $0x58] sm:$0xf]
      %v1232 = vld [vmem:[%s9 + $0x5c] sm:$0xf]
      %v1257 = vunpack.c.l.b16 %v1209
      %v1258 = vunpack.c.l.b16 %v1210
      %v1259 = vunpack.c.l.b16 %v1211
      %v1260 = vunpack.c.l.b16 %v1212
      %v1261 = vunpack.c.l.b16 %v1213
      %v1262 = vunpack.c.l.b16 %v1214
      %v1263 = vunpack.c.l.b16 %v1215
      %v1264 = vunpack.c.l.b16 %v1216
      %v1265 = vunpack.c.l.b16 %v1217
      %v1266 = vunpack.c.l.b16 %v1218
      %v1267 = vunpack.c.l.b16 %v1219
      %v1268 = vunpack.c.l.b16 %v1220
      %v1269 = vunpack.c.l.b16 %v1221
      %v1270 = vunpack.c.l.b16 %v1222
      %v1271 = vunpack.c.l.b16 %v1223
      %v1272 = vunpack.c.l.b16 %v1224
      %v1273 = vunpack.c.l.b16 %v1225
      %v1274 = vunpack.c.l.b16 %v1226
      %v1275 = vunpack.c.l.b16 %v1227
      %v1276 = vunpack.c.l.b16 %v1228
      %v1277 = vunpack.c.l.b16 %v1229
      %v1278 = vunpack.c.l.b16 %v1230
      %v1279 = vunpack.c.l.b16 %v1231
      %v1280 = vunpack.c.l.b16 %v1232
      %v1281 = vpack.c.b16 %v1258, %v1257
      %v1282 = vpack.c.b16 %v1260, %v1259
      %v1283 = vpack.c.b16 %v1262, %v1261
      %v1284 = vpack.c.b16 %v1264, %v1263
      %v1285 = vpack.c.b16 %v1266, %v1265
      %v1286 = vpack.c.b16 %v1268, %v1267
      %v1287 = vpack.c.b16 %v1270, %v1269
      %v1288 = vpack.c.b16 %v1272, %v1271
      %v1289 = vpack.c.b16 %v1274, %v1273
      %v1290 = vpack.c.b16 %v1276, %v1275
      %v1291 = vpack.c.b16 %v1278, %v1277
      %v1292 = vpack.c.b16 %v1280, %v1279
      %v1306 = vsel %vm1035, %v479, 0
      %1308 = vmatprep.subr.bf16.mxu0 0
      %1309 = vmatpush1.bf16.msra.mxu0 %v1288
      %1310 = vmatprep.subr.bf16.mxu0 0
      %1311 = vmatpush1.bf16.msra.mxu0 %v1287
      %1312 = vmatprep.subr.bf16.mxu0 0
      %1313 = vmatpush1.bf16.msra.mxu0 %v1286
      %1314 = vmatprep.subr.bf16.mxu0 0
      %1315 = vmatpush1.bf16.msra.mxu0 %v1285
      %1316 = vmatprep.subr.bf16.mxu0 0
      %1317 = vmatpush1.bf16.msra.mxu0 %v1284
      %1318 = vmatprep.subr.bf16.mxu0 0
      %1319 = vmatpush1.bf16.msra.mxu0 %v1283
      %1320 = vmatprep.subr.bf16.mxu0 0
      %1321 = vmatpush1.bf16.msra.mxu0 %v1282
      %1322 = vmatprep.subr.bf16.mxu0 0
      %1323 = vmatpush1.bf16.msra.mxu0 %v1281
      %1324 = vmatprep.subr.bf16.mxu0 0
      %1325 = vmatpush2.bf16.msra.mxu0 0
      %1326 = vmatprep.subr.bf16.mxu0 0
      %1327 = vmatpush2.bf16.msra.mxu0 0
      %1328 = vmatprep.subr.bf16.mxu0 0
      %1329 = vmatpush2.bf16.msra.mxu0 0
      %1330 = vmatprep.subr.bf16.mxu0 0
      %1331 = vmatpush2.bf16.msra.mxu0 0
      %1332 = vmatprep.subr.bf16.mxu0 0
      %1333 = vmatpush2.bf16.msra.mxu0 %v1292
      %1334 = vmatprep.subr.bf16.mxu0 0
      %1335 = vmatpush2.bf16.msra.mxu0 %v1291
      %1336 = vmatprep.subr.bf16.mxu0 0
      %1337 = vmatpush2.bf16.msra.mxu0 %v1290
      %1338 = vmatprep.subr.bf16.mxu0 0
      %1339 = vmatpush2.bf16.msra.mxu0 %v1289
      %1340 = vmatprep.mubr.bf16.mxu0 %v1306
      %1341 = vmatmul.mubr.bf16.gmra.mxu0 %v478
      %v1342 = vpop.f32.mrf.mxu0
      %v1343 = vadd.f32 0.0, %v1342
      %v1344 = vpop.f32.mrf.mxu0
      %v1345 = vpop.f32.mrf.mxu0
      %v1346 = vadd.f32 0.0, %v1345
      %v1347 = vpop.f32.mrf.mxu0
      %1348 = vdwg.mxu0
      %v1369 = vunpack.c.l.b16 %v1189
      %v1370 = vunpack.c.l.b16 %v1190
      %v1371 = vunpack.c.l.b16 %v1191
      %v1372 = vunpack.c.l.b16 %v1192
      %v1373 = vunpack.c.l.b16 %v1193
      %v1374 = vunpack.c.l.b16 %v1194
      %v1375 = vunpack.c.l.b16 %v1195
      %v1376 = vunpack.c.l.b16 %v1196
      %v1377 = vunpack.c.l.b16 %v1197
      %v1378 = vunpack.c.l.b16 %v1198
      %v1379 = vunpack.c.l.b16 %v1199
      %v1380 = vunpack.c.l.b16 %v1200
      %v1381 = vunpack.c.l.b16 %v1201
      %v1382 = vunpack.c.l.b16 %v1202
      %v1383 = vunpack.c.l.b16 %v1203
      %v1384 = vunpack.c.l.b16 %v1204
      %v1385 = vunpack.c.l.b16 %v1205
      %v1386 = vunpack.c.l.b16 %v1206
      %v1387 = vunpack.c.l.b16 %v1207
      %v1388 = vunpack.c.l.b16 %v1208
      %v1389 = vpack.c.b16 %v1370, %v1369
      %v1390 = vpack.c.b16 %v1372, %v1371
      %v1391 = vpack.c.b16 %v1374, %v1373
      %v1392 = vpack.c.b16 %v1376, %v1375
      %v1393 = vpack.c.b16 %v1378, %v1377
      %v1394 = vpack.c.b16 %v1380, %v1379
      %v1395 = vpack.c.b16 %v1382, %v1381
      %v1396 = vpack.c.b16 %v1384, %v1383
      %v1397 = vpack.c.b16 %v1386, %v1385
      %v1398 = vpack.c.b16 %v1388, %v1387
      %vm1409 = vcmask 261120
      %v1411 = vsel %vm1409, %v1188, 0
      %1413 = vmatprep.subr.bf16.mxu0 0
      %1414 = vmatpush1.bf16.msra.mxu0 %v1396
      %1415 = vmatprep.subr.bf16.mxu0 0
      %1416 = vmatpush1.bf16.msra.mxu0 %v1395
      %1417 = vmatprep.subr.bf16.mxu0 0
      %1418 = vmatpush1.bf16.msra.mxu0 %v1394
      %1419 = vmatprep.subr.bf16.mxu0 0
      %1420 = vmatpush1.bf16.msra.mxu0 %v1393
      %1421 = vmatprep.subr.bf16.mxu0 0
      %1422 = vmatpush1.bf16.msra.mxu0 %v1392
      %1423 = vmatprep.subr.bf16.mxu0 0
      %1424 = vmatpush1.bf16.msra.mxu0 %v1391
      %1425 = vmatprep.subr.bf16.mxu0 0
      %1426 = vmatpush1.bf16.msra.mxu0 %v1390
      %1427 = vmatprep.subr.bf16.mxu0 0
      %1428 = vmatpush1.bf16.msra.mxu0 %v1389
      %1429 = vmatprep.subr.bf16.mxu0 0
      %1430 = vmatpush2.bf16.msra.mxu0 0
      %1431 = vmatprep.subr.bf16.mxu0 0
      %1432 = vmatpush2.bf16.msra.mxu0 0
      %1433 = vmatprep.subr.bf16.mxu0 0
      %1434 = vmatpush2.bf16.msra.mxu0 0
      %1435 = vmatprep.subr.bf16.mxu0 0
      %1436 = vmatpush2.bf16.msra.mxu0 0
      %1437 = vmatprep.subr.bf16.mxu0 0
      %1438 = vmatpush2.bf16.msra.mxu0 0
      %1439 = vmatprep.subr.bf16.mxu0 0
      %1440 = vmatpush2.bf16.msra.mxu0 0
      %1441 = vmatprep.subr.bf16.mxu0 0
      %1442 = vmatpush2.bf16.msra.mxu0 %v1398
      %1443 = vmatprep.subr.bf16.mxu0 0
      %1444 = vmatpush2.bf16.msra.mxu0 %v1397
      %1445 = vmatprep.mubr.bf16.mxu0 %v1411
      %1446 = vmatmul.mubr.bf16.gmra.mxu0 %v1187
      %v1447 = vpop.f32.mrf.mxu0
      %v1448 = vadd.f32 %v1343, %v1447
      %v1449 = vpop.f32.mrf.mxu0
      %v1450 = vpop.f32.mrf.mxu0
      %v1451 = vadd.f32 %v1346, %v1450
      %v1452 = vpop.f32.mrf.mxu0
      %1453 = vdwg.mxu0
      %v1454 = vld [vmem:[%s10] sm:$0x1]
      %v1456 = vlaneseq
      %v1457 = vshrl.u32 %v1456, 7
      %v1458 = vsub.s32 0, %v1457
      %v1459 = vrot.slane %v1454, %v1458
      %v1461 = vadd.f32 %v1448, %v1459
      %v1462 = vadd.f32 %v1451, %v1459
      %v1463 = vunpack.c.l.bf16 %v391
      %v1464 = vunpack.c.l.bf16 %v392
      %v1465 = vmul.f32 %v1463, 0.5
      %v1466 = vmul.f32 %v1464, 0.5
      %v1467 = vadd.f32 %v1465, %v1461
      %v1468 = vadd.f32 %v1466, %v1462
      %v1469 = vmax.f32 %v1467, 0.0
      %v1470 = vmax.f32 %v1468, 0.0
      %1471 = vst.msk [vmem:[%s388] sm:$0xff] %vm420, %v1469
      %1472 = vst.msk [vmem:[%s388 + $0x8] sm:$0xff] %vm420, %v1470
      %s1473 = smul.u32 2, %s22
      %p1474 = scmp.lt.s32.totalorder %s1473, 3
      %s1475 = scalar_select %p1474, %s1473, 3
      %s1476 = smul.addr %s1475, 8
      %s1477 = scalar_lea.vmem %s11, %s1476
      // Predicated region
      $region65: #{tpu_custom_call.1} parent=63 // pred_check
        %p1478 = pneg %p276
      $region66: #{tpu_custom_call.1} parent=63 // pred_check_branch
        %1480 = sbr.rel (%p1478) target = $region68
      $region67: #{tpu_custom_call.1} parent=63 // pred_region
        %s1481 = smul.u32 2, %s22
      $region68: #{tpu_custom_call.1} parent=63 // pred_fallthru
        _
    $region64: #{tpu_custom_call.1} parent=5 // pred_fallthru
      _
    %p1482 = scmp.le.s32.totalorder 2, %s17
    // Predicated region
    $region69: #{tpu_custom_call.1} parent=5 // pred_check
      %p1483 = pneg %p1482
    $region70: #{tpu_custom_call.1} parent=5 // pred_check_branch
      %1485 = sbr.rel (%p1483) target = $region72
    $region71: #{tpu_custom_call.1} parent=5 // pred_region
      %s1486 = ssub.s32 %s17, 2
      // Predicated region
      $region73: #{tpu_custom_call.1} parent=71 // pred_check
        %p1487 = pneg %p282
      $region74: #{tpu_custom_call.1} parent=71 // pred_check_branch
        %1489 = sbr.rel (%p1487) target = $region76
      $region75: #{tpu_custom_call.1} parent=71 // pred_region
        %s1490 = smul.u32 2, %s23
        %p1491 = scmp.lt.s32.totalorder %s1490, 3
        %s1492 = scalar_select %p1491, %s1490, 3
        %s1493 = smul.addr %s1492, 8
        %s1494 = scalar_lea.vmem %s11, %s1493
      $region76: #{tpu_custom_call.1} parent=71 // pred_fallthru
        _
    $region72: #{tpu_custom_call.1} parent=5 // pred_fallthru
      _
  $region6: #{tpu_custom_call.1} parent=0 // loop_footer
    %s21 = sadd.s32 1, %s17
  $region7: #{tpu_custom_call.1} parent=0 // loop_footer_branch
    %16 = sbr.rel target = $region3
  $region8: #{tpu_custom_call.1} parent=0 // loop_exit
    _

</llo_original>
